<compile_context>
chip_gen: v7x
topology: tpu7x:2x2x1
jax: 0.10.0
libtpu: 0.0.40
codegen_flags: <defaults>
</compile_context>

<pallas_src>
import functools

import jax
import jax.numpy as jnp
from jax.experimental import pallas as pl
from jax.experimental.pallas import tpu as pltpu


def _swish(x):
    return x * jax.nn.sigmoid(x)


def mbconv_kernel(x_ref, ew_ref, eb_ref, dw_ref, db_ref,
                  srw_ref, srb_ref, sew_ref, seb_ref,
                  pw_ref, pb_ref, out_ref, *, k, Bt, H, W, Cexp, Csq, has_skip):
    """Bt images per grid step, pixel-packed (rows, W*C) lane-dense layout.

    x_ref   : (Bt*H, W*Cin)    lane-dense input
    ew_ref  : (W*Cin, W*Cexp)  block-diag expand 1x1 weight (BN0 folded)
    eb_ref  : (1, W*Cexp)      folded BN0 bias, tiled over W
    dw_ref  : (k*k, W*Cexp)    depthwise taps (BN1 folded), tiled over W,
                               width-edge masks pre-folded in
    db_ref  : (1, W*Cexp)      folded BN1 bias, tiled over W
    srw_ref : (Csq, W*Cexp)    SE reduce weight rows, tiled over W, pre-scaled by 1/(H*W)
    srb_ref : (1, Csq)
    sew_ref : (Csq, W*Cexp)    SE expand weight rows, tiled over W
    seb_ref : (1, W*Cexp)
    pw_ref  : (W*Cexp, W*Cout) block-diag project 1x1 weight (BN2 folded)
    pb_ref  : (1, W*Cout)      folded BN2 bias, tiled over W
    out_ref : (Bt*H, W*Cout)   lane-dense output
    """
    p = (k - 1) // 2
    L = W * Cexp

    x = x_ref[...]                                   # (Bt*H, W*Cin)

    # --- expand 1x1 conv (block-diagonal) + BN0 + swish: one MXU matmul, M = Bt*H ---
    y = jnp.dot(x, ew_ref[...], preferred_element_type=jnp.float32) + eb_ref[...]
    y = _swish(y)                                    # (Bt*H, W*Cexp)

    # Hoisted constant loads (reused across the per-image loop).
    dwv = dw_ref[...]                                # (k*k, L)
    dbv = db_ref[...]                                # (1, L)
    srwv = srw_ref[...]                              # (Csq, L)
    srbv = srb_ref[...]                              # (1, Csq)
    sewv = sew_ref[...]                              # (Csq, L)
    sebv = seb_ref[...]                              # (1, L)
    row_idx = jax.lax.broadcasted_iota(jnp.int32, (H, L), 0)

    def shift_rows(a, di):                           # out[h] = a[h + di], zero at edges
        if di == 0:
            return a
        t = pltpu.roll(a, shift=(-di) % H, axis=0)
        if di > 0:
            return jnp.where(row_idx < H - di, t, 0.0)
        return jnp.where(row_idx >= -di, t, 0.0)

    def shift_cols(a, dj):                           # out[w] = a[w + dj]; wrapped edge
        if dj == 0:                                  # lanes are killed by the pre-masked
            return a                                 # taps, so no select here
        return pltpu.roll(a, shift=(-dj * Cexp) % L, axis=1)

    ys = []
    for b in range(Bt):                              # depthwise + SE are per-image
        yb = y[b * H:(b + 1) * H, :]                 # (H, L) static slice

        # --- depthwise kxk conv, stride 1, SAME padding, via rolls ---
        rows = [shift_rows(yb, di) for di in range(-p, p + 1)]
        acc = rows[p] * dwv[p * k + p]               # center tap seeds the accumulator
        for i in range(k):
            for j in range(k):
                if i == p and j == p:
                    continue
                acc = acc + shift_cols(rows[i], j - p) * dwv[i * k + j]
        yb = _swish(acc + dbv)                       # BN1 + swish, (H, L)

        # --- squeeze & excitation, entirely on VPU/XLU (no MXU fill/drain) ---
        row_sum = jnp.sum(yb, axis=0, keepdims=True)                 # (1, L)
        gate_pre = sebv
        for c in range(Csq):
            s_c = (jnp.sum(row_sum * srwv[c:c + 1, :], axis=-1, keepdims=True)
                   + srbv[:, c:c + 1])                               # (1, 1)
            gate_pre = gate_pre + _swish(s_c) * sewv[c:c + 1, :]
        yb = yb * jax.nn.sigmoid(gate_pre)                           # gate bcast over rows
        ys.append(yb)

    yse = ys[0] if Bt == 1 else jnp.concatenate(ys, axis=0)          # (Bt*H, L)

    # --- project 1x1 conv (block-diagonal) + BN2: one MXU matmul, M = Bt*H ---
    z = jnp.dot(yse, pw_ref[...], preferred_element_type=jnp.float32) + pb_ref[...]

    # --- identity skip (stride==1 and Cin==Cout; packed layouts match) ---
    if has_skip:
        z = z + x
    # TODO(synk): drop_connect (training-time stochastic depth) not implemented;
    #             forward is evaluated with drop_connect_rate=None (eval path).

    out_ref[...] = z.astype(out_ref.dtype)           # unmasked lane-dense store


def pack_mbconv_params(params, *, k, H, W):
    """One-time packing of weights for the pixel-packed kernel layout (hoisted out of
    the per-call path)."""
    Cexp = params["expand_w"].shape[1]
    p = (k - 1) // 2

    def block_diag(wmat):
        cin, cout = wmat.shape
        eye = jnp.eye(W, dtype=wmat.dtype)
        return jnp.einsum("pq,cd->pcqd", eye, wmat).reshape(W * cin, W * cout)

    # Depthwise taps tiled over W, with the width (column) edge masks pre-folded in:
    # for tap (i,j) the lanes of invalid output width positions are zeroed, so the
    # kernel's column shift needs no select.
    dw = params["dw_w"].reshape(k * k, Cexp)
    w_pos = jnp.arange(W)
    taps = []
    for i in range(k):
        for j in range(k):
            dj = j - p
            valid = ((w_pos + dj) >= 0) & ((w_pos + dj) <= W - 1)      # (W,)
            tap = jnp.where(valid[:, None], dw[i * k + j][None, :], 0.0)
            taps.append(tap.reshape(1, W * Cexp))
    dw_p = jnp.concatenate(taps, axis=0)                               # (k*k, W*Cexp)

    return dict(
        ew=block_diag(params["expand_w"]),                             # (W*Cin, W*Cexp)
        eb=jnp.tile(params["expand_b"], (1, W)),                       # (1, W*Cexp)
        dw=dw_p,
        db=jnp.tile(params["dw_b"], (1, W)),                           # (1, W*Cexp)
        srw=jnp.tile(params["se_reduce_w"].T, (1, W)) / float(H * W),  # (Csq, W*Cexp)
        srb=params["se_reduce_b"],                                     # (1, Csq)
        sew=jnp.tile(params["se_expand_w"], (1, W)),                   # (Csq, W*Cexp)
        seb=jnp.tile(params["se_expand_b"], (1, W)),                   # (1, W*Cexp)
        pw=block_diag(params["project_w"]),                            # (W*Cexp, W*Cout)
        pb=jnp.tile(params["project_b"], (1, W)),                      # (1, W*Cout)
    )


def mbconv_forward(x, packed, *, k, has_skip, batch_tile=None):
    B, H, W, Cin = x.shape
    Cexp = packed["eb"].shape[1] // W
    Cout = packed["pb"].shape[1] // W
    Csq = packed["srw"].shape[0]

    # Lane-density / tiling guards (review caveat): at other EfficientNet shapes
    # (e.g. W=14) pad W*C up to a multiple of 128 in the wrapper before calling.
    assert (W * Cin) % 128 == 0 and (W * Cexp) % 128 == 0 and (W * Cout) % 128 == 0, \
        "packed lane dims must be multiples of 128 (pad in the wrapper otherwise)"
    assert H % 8 == 0, "H must be a multiple of the sublane tile (8)"

    if batch_tile is None:
        # Target M = Bt*H >= 128 to fill the MXU pipe. On v7x prefer batch_tile=B//2
        # so the "parallel" grid axis has >= 2 steps for the two TensorCores.
        batch_tile = min(B, max(1, -(-128 // H)))
        while B % batch_tile:
            batch_tile -= 1
    Bt = batch_tile
    assert B % Bt == 0

    x2 = x.reshape(B * H, W * Cin)                   # pixel-packed, lane-dense

    kernel = functools.partial(mbconv_kernel, k=k, Bt=Bt, H=H, W=W,
                               Cexp=Cexp, Csq=Csq, has_skip=has_skip)

    def w_spec(arr):
        # Constant-across-grid weights (same block every step, so no re-fetch between
        # consecutive steps). pl.Buffered(1) single-buffering is a further VMEM saving
        # once the block-diag weights grow; negligible at this size.
        n = arr.ndim
        return pl.BlockSpec(arr.shape, lambda g, n=n: (0,) * n)

    grid_spec = pltpu.PrefetchScalarGridSpec(
        num_scalar_prefetch=0,
        grid=(B // Bt,),
        in_specs=[
            pl.BlockSpec((Bt * H, W * Cin), lambda g: (g, 0)),
            w_spec(packed["ew"]), w_spec(packed["eb"]),
            w_spec(packed["dw"]), w_spec(packed["db"]),
            w_spec(packed["srw"]), w_spec(packed["srb"]),
            w_spec(packed["sew"]), w_spec(packed["seb"]),
            w_spec(packed["pw"]), w_spec(packed["pb"]),
        ],
        out_specs=pl.BlockSpec((Bt * H, W * Cout), lambda g: (g, 0)),
    )

    out2 = pl.pallas_call(
        kernel,
        out_shape=jax.ShapeDtypeStruct((B * H, W * Cout), jnp.float32),
        grid_spec=grid_spec,
        compiler_params=pltpu.CompilerParams(
            dimension_semantics=("parallel",),
            vmem_limit_bytes=32 * 1024 * 1024),
    )(x2, packed["ew"], packed["eb"], packed["dw"], packed["db"],
      packed["srw"], packed["srb"], packed["sew"], packed["seb"],
      packed["pw"], packed["pb"])

    return out2.reshape(B, H, W, Cout)


# ---------------- pure-JAX reference (sanity check only) ----------------
def mbconv_reference(x, params, *, k, has_skip):
    B, H, W, _ = x.shape
    p = (k - 1) // 2
    y = jnp.einsum("bhwc,cd->bhwd", x, params["expand_w"]) + params["expand_b"][0]
    y = _swish(y)
    yp = jnp.pad(y, ((0, 0), (p, p), (p, p), (0, 0)))
    acc = jnp.zeros_like(y)
    for i in range(k):
        for j in range(k):
            acc = acc + yp[:, i:i + H, j:j + W, :] * params["dw_w"][i, j]
    y = _swish(acc + params["dw_b"][0])
    pooled = jnp.mean(y, axis=(1, 2))
    s = _swish(pooled @ params["se_reduce_w"] + params["se_reduce_b"][0])
    s = s @ params["se_expand_w"] + params["se_expand_b"][0]
    y = y * jax.nn.sigmoid(s)[:, None, None, :]
    z = jnp.einsum("bhwc,cd->bhwd", y, params["project_w"]) + params["project_b"][0]
    if has_skip:
        z = z + x
    return z


def fold_bn(gamma, beta, mean, var, eps):
    scale = gamma / jnp.sqrt(var + eps)
    bias = beta - mean * scale
    return scale, bias


if __name__ == "__main__":
    # block_args: input_filters=8, output_filters=8, expand_ratio=2, kernel_size=3,
    #             stride=1, se_ratio=0.25, id_skip=True; bn_eps=1e-3
    B, H, W = 2, 16, 16
    Cin, expand_ratio, k, se_ratio, Cout = 8, 2, 3, 0.25, 8
    Cexp = Cin * expand_ratio
    Csq = max(1, int(Cin * se_ratio))
    eps = 1e-3
    has_skip = (Cin == Cout)  # id_skip and stride == 1

    key = jax.random.PRNGKey(0)
    ks = jax.random.split(key, 24)
    f32 = jnp.float32

    # Raw (unfused) parameters, deterministic init.
    expand_w_raw = 0.2 * jax.random.normal(ks[0], (Cin, Cexp), f32)
    dw_w_raw = 0.2 * jax.random.normal(ks[1], (k, k, Cexp), f32)
    project_w_raw = 0.2 * jax.random.normal(ks[2], (Cexp, Cout), f32)
    se_reduce_w = 0.2 * jax.random.normal(ks[3], (Cexp, Csq), f32)
    se_reduce_b = 0.1 * jax.random.normal(ks[4], (Csq,), f32)
    se_expand_w = 0.2 * jax.random.normal(ks[5], (Csq, Cexp), f32)
    se_expand_b = 0.1 * jax.random.normal(ks[6], (Cexp,), f32)

    def bn_params(k1, k2, k3, k4, c):
        gamma = 1.0 + 0.1 * jax.random.normal(k1, (c,), f32)
        beta = 0.1 * jax.random.normal(k2, (c,), f32)
        mean = 0.1 * jax.random.normal(k3, (c,), f32)
        var = jax.random.uniform(k4, (c,), f32, minval=0.5, maxval=1.5)
        return gamma, beta, mean, var

    s0, b0 = fold_bn(*bn_params(ks[7], ks[8], ks[9], ks[10], Cexp), eps)
    s1, b1 = fold_bn(*bn_params(ks[11], ks[12], ks[13], ks[14], Cexp), eps)
    s2, b2 = fold_bn(*bn_params(ks[15], ks[16], ks[17], ks[18], Cout), eps)

    params = {
        "expand_w": expand_w_raw * s0[None, :],
        "expand_b": b0[None, :],
        "dw_w": dw_w_raw * s1[None, None, :],
        "dw_b": b1[None, :],
        "se_reduce_w": se_reduce_w,
        "se_reduce_b": se_reduce_b[None, :],
        "se_expand_w": se_expand_w,
        "se_expand_b": se_expand_b[None, :],
        "project_w": project_w_raw * s2[None, :],
        "project_b": b2[None, :],
    }

    x = jax.random.normal(ks[19], (B, H, W, Cin), f32)  # NHWC (== NCHW [2,8,16,16])

    # One-time packing (hoisted out of the per-call path) + jitted forward.
    packed = pack_mbconv_params(params, k=k, H=H, W=W)
    packed = jax.tree_util.tree_map(jax.block_until_ready, packed)
    fwd = jax.jit(functools.partial(mbconv_forward, k=k, has_skip=has_skip))

    out = fwd(x, packed)
    out = jax.block_until_ready(out)

    ref = mbconv_reference(x, params, k=k, has_skip=has_skip)
    assert out.shape == (B, H, W, Cout)
    assert jnp.allclose(out, ref, atol=2e-3, rtol=2e-3), "mismatch vs reference"

    print("KERNEL_OK")
</pallas_src>

<mosaic_0001>
module attributes {stable_mosaic.version = 11 : i64} {
  func.func @mbconv_kernel(%arg0: i32, %arg1: memref<32x128xf32, #tpu.memory_space<vmem>>, %arg2: memref<128x256xf32, #tpu.memory_space<vmem>>, %arg3: memref<1x256xf32, #tpu.memory_space<vmem>>, %arg4: memref<9x256xf32, #tpu.memory_space<vmem>>, %arg5: memref<1x256xf32, #tpu.memory_space<vmem>>, %arg6: memref<2x256xf32, #tpu.memory_space<vmem>>, %arg7: memref<1x2xf32, #tpu.memory_space<vmem>>, %arg8: memref<2x256xf32, #tpu.memory_space<vmem>>, %arg9: memref<1x256xf32, #tpu.memory_space<vmem>>, %arg10: memref<256x128xf32, #tpu.memory_space<vmem>>, %arg11: memref<1x128xf32, #tpu.memory_space<vmem>>, %arg12: memref<32x128xf32, #tpu.memory_space<vmem>>) attributes {dimension_semantics = [#tpu.dimension_semantics<parallel>], iteration_bounds = array<i64: 1>, scalar_prefetch = 0 : i64, scratch_operands = 0 : i64, tpu.core_type = #tpu.core_type<tc>, window_params = [{transform_indices = @transform_0, window_bounds = array<i64: 32, 128>}, {pipeline_mode = #tpu.pipeline_mode<synchronous>, transform_indices = @transform_1, window_bounds = array<i64: 128, 256>}, {pipeline_mode = #tpu.pipeline_mode<synchronous>, transform_indices = @transform_2, window_bounds = array<i64: 1, 256>}, {pipeline_mode = #tpu.pipeline_mode<synchronous>, transform_indices = @transform_3, window_bounds = array<i64: 9, 256>}, {pipeline_mode = #tpu.pipeline_mode<synchronous>, transform_indices = @transform_4, window_bounds = array<i64: 1, 256>}, {pipeline_mode = #tpu.pipeline_mode<synchronous>, transform_indices = @transform_5, window_bounds = array<i64: 2, 256>}, {pipeline_mode = #tpu.pipeline_mode<synchronous>, transform_indices = @transform_6, window_bounds = array<i64: 1, 2>}, {pipeline_mode = #tpu.pipeline_mode<synchronous>, transform_indices = @transform_7, window_bounds = array<i64: 2, 256>}, {pipeline_mode = #tpu.pipeline_mode<synchronous>, transform_indices = @transform_8, window_bounds = array<i64: 1, 256>}, {pipeline_mode = #tpu.pipeline_mode<synchronous>, transform_indices = @transform_9, window_bounds = array<i64: 256, 128>}, {pipeline_mode = #tpu.pipeline_mode<synchronous>, transform_indices = @transform_10, window_bounds = array<i64: 1, 128>}, {transform_indices = @transform_11, window_bounds = array<i64: 32, 128>}]} {
    %c0 = arith.constant 0 : index
    %c0_0 = arith.constant 0 : index
    %0 = vector.load %arg1[%c0, %c0_0] : memref<32x128xf32, #tpu.memory_space<vmem>>, vector<32x128xf32>
    %c0_1 = arith.constant 0 : index
    %c0_2 = arith.constant 0 : index
    %1 = vector.load %arg2[%c0_1, %c0_2] : memref<128x256xf32, #tpu.memory_space<vmem>>, vector<128x256xf32>
    %cst = arith.constant dense<0.000000e+00> : vector<32x256xf32>
    %2 = tpu.matmul %0, %1, %cst {dimension_numbers = #tpu.dot_dimension_numbers<[1], [0], [0], [1], [0, 0, 1, 1], [], []>} : vector<32x128xf32>, vector<128x256xf32>, vector<32x256xf32> -> vector<32x256xf32>
    %c0_3 = arith.constant 0 : index
    %c0_4 = arith.constant 0 : index
    %3 = vector.load %arg3[%c0_3, %c0_4] : memref<1x256xf32, #tpu.memory_space<vmem>>, vector<1x256xf32>
    %4 = vector.broadcast %3 : vector<1x256xf32> to vector<32x256xf32>
    %5 = arith.addf %2, %4 : vector<32x256xf32>
    %6 = arith.negf %5 : vector<32x256xf32>
    %7 = math.exp %6 : vector<32x256xf32>
    %cst_5 = arith.constant 1.000000e+00 : f32
    %8 = vector.broadcast %cst_5 : f32 to vector<32x256xf32>
    %9 = arith.addf %8, %7 : vector<32x256xf32>
    %10 = arith.divf %8, %9 : vector<32x256xf32>
    %11 = arith.mulf %5, %10 : vector<32x256xf32>
    %c0_6 = arith.constant 0 : index
    %c0_7 = arith.constant 0 : index
    %12 = vector.load %arg4[%c0_6, %c0_7] : memref<9x256xf32, #tpu.memory_space<vmem>>, vector<9x256xf32>
    %c0_8 = arith.constant 0 : index
    %c0_9 = arith.constant 0 : index
    %13 = vector.load %arg5[%c0_8, %c0_9] : memref<1x256xf32, #tpu.memory_space<vmem>>, vector<1x256xf32>
    %c0_10 = arith.constant 0 : index
    %c0_11 = arith.constant 0 : index
    %14 = vector.load %arg6[%c0_10, %c0_11] : memref<2x256xf32, #tpu.memory_space<vmem>>, vector<2x256xf32>
    %c0_12 = arith.constant 0 : index
    %c0_13 = arith.constant 0 : index
    %15 = vector.load %arg7[%c0_12, %c0_13] : memref<1x2xf32, #tpu.memory_space<vmem>>, vector<1x2xf32>
    %c0_14 = arith.constant 0 : index
    %c0_15 = arith.constant 0 : index
    %16 = vector.load %arg8[%c0_14, %c0_15] : memref<2x256xf32, #tpu.memory_space<vmem>>, vector<2x256xf32>
    %c0_16 = arith.constant 0 : index
    %c0_17 = arith.constant 0 : index
    %17 = vector.load %arg9[%c0_16, %c0_17] : memref<1x256xf32, #tpu.memory_space<vmem>>, vector<1x256xf32>
    %18 = tpu.iota {dimensions = array<i32: 0>} : vector<16x256xi32>
    %19 = vector.extract_strided_slice %11 {offsets = [0, 0], sizes = [16, 256], strides = [1, 1]} : vector<32x256xf32> to vector<16x256xf32>
    %c1_i32 = arith.constant 1 : i32
    %20 = tpu.dynamic_rotate %19 by %c1_i32 dim 0 : vector<16x256xf32>, i32 -> vector<16x256xf32>
    %c1_i32_18 = arith.constant 1 : i32
    %21 = vector.broadcast %c1_i32_18 : i32 to vector<16x256xi32>
    %22 = arith.cmpi sge, %18, %21 : vector<16x256xi32>
    %cst_19 = arith.constant 0.000000e+00 : f32
    %23 = vector.broadcast %cst_19 : f32 to vector<16x256xf32>
    %24 = arith.select %22, %20, %23 : vector<16x256xi1>, vector<16x256xf32>
    %c15_i32 = arith.constant 15 : i32
    %25 = tpu.dynamic_rotate %19 by %c15_i32 dim 0 : vector<16x256xf32>, i32 -> vector<16x256xf32>
    %c15_i32_20 = arith.constant 15 : i32
    %26 = vector.broadcast %c15_i32_20 : i32 to vector<16x256xi32>
    %27 = arith.cmpi slt, %18, %26 : vector<16x256xi32>
    %cst_21 = arith.constant 0.000000e+00 : f32
    %28 = vector.broadcast %cst_21 : f32 to vector<16x256xf32>
    %29 = arith.select %27, %25, %28 : vector<16x256xi1>, vector<16x256xf32>
    %30 = vector.extract_strided_slice %12 {offsets = [4, 0], sizes = [1, 256], strides = [1, 1]} : vector<9x256xf32> to vector<1x256xf32>
    %31 = vector.shape_cast %30 : vector<1x256xf32> to vector<256xf32>
    %32 = vector.shape_cast %31 : vector<256xf32> to vector<1x256xf32>
    %33 = vector.broadcast %32 : vector<1x256xf32> to vector<16x256xf32>
    %34 = arith.mulf %19, %33 : vector<16x256xf32>
    %c16_i32 = arith.constant 16 : i32
    %35 = tpu.dynamic_rotate %24 by %c16_i32 dim 1 : vector<16x256xf32>, i32 -> vector<16x256xf32>
    %36 = vector.extract_strided_slice %12 {offsets = [0, 0], sizes = [1, 256], strides = [1, 1]} : vector<9x256xf32> to vector<1x256xf32>
    %37 = vector.shape_cast %36 : vector<1x256xf32> to vector<256xf32>
    %38 = vector.shape_cast %37 : vector<256xf32> to vector<1x256xf32>
    %39 = vector.broadcast %38 : vector<1x256xf32> to vector<16x256xf32>
    %40 = arith.mulf %35, %39 : vector<16x256xf32>
    %41 = arith.addf %34, %40 : vector<16x256xf32>
    %42 = vector.extract_strided_slice %12 {offsets = [1, 0], sizes = [1, 256], strides = [1, 1]} : vector<9x256xf32> to vector<1x256xf32>
    %43 = vector.shape_cast %42 : vector<1x256xf32> to vector<256xf32>
    %44 = vector.shape_cast %43 : vector<256xf32> to vector<1x256xf32>
    %45 = vector.broadcast %44 : vector<1x256xf32> to vector<16x256xf32>
    %46 = arith.mulf %24, %45 : vector<16x256xf32>
    %47 = arith.addf %41, %46 : vector<16x256xf32>
    %c240_i32 = arith.constant 240 : i32
    %48 = tpu.dynamic_rotate %24 by %c240_i32 dim 1 : vector<16x256xf32>, i32 -> vector<16x256xf32>
    %49 = vector.extract_strided_slice %12 {offsets = [2, 0], sizes = [1, 256], strides = [1, 1]} : vector<9x256xf32> to vector<1x256xf32>
    %50 = vector.shape_cast %49 : vector<1x256xf32> to vector<256xf32>
    %51 = vector.shape_cast %50 : vector<256xf32> to vector<1x256xf32>
    %52 = vector.broadcast %51 : vector<1x256xf32> to vector<16x256xf32>
    %53 = arith.mulf %48, %52 : vector<16x256xf32>
    %54 = arith.addf %47, %53 : vector<16x256xf32>
    %c16_i32_22 = arith.constant 16 : i32
    %55 = tpu.dynamic_rotate %19 by %c16_i32_22 dim 1 : vector<16x256xf32>, i32 -> vector<16x256xf32>
    %56 = vector.extract_strided_slice %12 {offsets = [3, 0], sizes = [1, 256], strides = [1, 1]} : vector<9x256xf32> to vector<1x256xf32>
    %57 = vector.shape_cast %56 : vector<1x256xf32> to vector<256xf32>
    %58 = vector.shape_cast %57 : vector<256xf32> to vector<1x256xf32>
    %59 = vector.broadcast %58 : vector<1x256xf32> to vector<16x256xf32>
    %60 = arith.mulf %55, %59 : vector<16x256xf32>
    %61 = arith.addf %54, %60 : vector<16x256xf32>
    %c240_i32_23 = arith.constant 240 : i32
    %62 = tpu.dynamic_rotate %19 by %c240_i32_23 dim 1 : vector<16x256xf32>, i32 -> vector<16x256xf32>
    %63 = vector.extract_strided_slice %12 {offsets = [5, 0], sizes = [1, 256], strides = [1, 1]} : vector<9x256xf32> to vector<1x256xf32>
    %64 = vector.shape_cast %63 : vector<1x256xf32> to vector<256xf32>
    %65 = vector.shape_cast %64 : vector<256xf32> to vector<1x256xf32>
    %66 = vector.broadcast %65 : vector<1x256xf32> to vector<16x256xf32>
    %67 = arith.mulf %62, %66 : vector<16x256xf32>
    %68 = arith.addf %61, %67 : vector<16x256xf32>
    %c16_i32_24 = arith.constant 16 : i32
    %69 = tpu.dynamic_rotate %29 by %c16_i32_24 dim 1 : vector<16x256xf32>, i32 -> vector<16x256xf32>
    %70 = vector.extract_strided_slice %12 {offsets = [6, 0], sizes = [1, 256], strides = [1, 1]} : vector<9x256xf32> to vector<1x256xf32>
    %71 = vector.shape_cast %70 : vector<1x256xf32> to vector<256xf32>
    %72 = vector.shape_cast %71 : vector<256xf32> to vector<1x256xf32>
    %73 = vector.broadcast %72 : vector<1x256xf32> to vector<16x256xf32>
    %74 = arith.mulf %69, %73 : vector<16x256xf32>
    %75 = arith.addf %68, %74 : vector<16x256xf32>
    %76 = vector.extract_strided_slice %12 {offsets = [7, 0], sizes = [1, 256], strides = [1, 1]} : vector<9x256xf32> to vector<1x256xf32>
    %77 = vector.shape_cast %76 : vector<1x256xf32> to vector<256xf32>
    %78 = vector.shape_cast %77 : vector<256xf32> to vector<1x256xf32>
    %79 = vector.broadcast %78 : vector<1x256xf32> to vector<16x256xf32>
    %80 = arith.mulf %29, %79 : vector<16x256xf32>
    %81 = arith.addf %75, %80 : vector<16x256xf32>
    %c240_i32_25 = arith.constant 240 : i32
    %82 = tpu.dynamic_rotate %29 by %c240_i32_25 dim 1 : vector<16x256xf32>, i32 -> vector<16x256xf32>
    %83 = vector.extract_strided_slice %12 {offsets = [8, 0], sizes = [1, 256], strides = [1, 1]} : vector<9x256xf32> to vector<1x256xf32>
    %84 = vector.shape_cast %83 : vector<1x256xf32> to vector<256xf32>
    %85 = vector.shape_cast %84 : vector<256xf32> to vector<1x256xf32>
    %86 = vector.broadcast %85 : vector<1x256xf32> to vector<16x256xf32>
    %87 = arith.mulf %82, %86 : vector<16x256xf32>
    %88 = arith.addf %81, %87 : vector<16x256xf32>
    %89 = vector.broadcast %13 : vector<1x256xf32> to vector<16x256xf32>
    %90 = arith.addf %88, %89 : vector<16x256xf32>
    %91 = arith.negf %90 : vector<16x256xf32>
    %92 = math.exp %91 : vector<16x256xf32>
    %cst_26 = arith.constant 1.000000e+00 : f32
    %93 = vector.broadcast %cst_26 : f32 to vector<16x256xf32>
    %94 = arith.addf %93, %92 : vector<16x256xf32>
    %95 = arith.divf %93, %94 : vector<16x256xf32>
    %96 = arith.mulf %90, %95 : vector<16x256xf32>
    %cst_27 = arith.constant dense<0.000000e+00> : vector<256xf32>
    %97 = vector.multi_reduction <add>, %96, %cst_27 [0] : vector<16x256xf32> to vector<256xf32>
    %98 = vector.shape_cast %97 : vector<256xf32> to vector<1x256xf32>
    %99 = vector.extract_strided_slice %14 {offsets = [0, 0], sizes = [1, 256], strides = [1, 1]} : vector<2x256xf32> to vector<1x256xf32>
    %100 = arith.mulf %98, %99 : vector<1x256xf32>
    %cst_28 = arith.constant dense<0.000000e+00> : vector<1xf32>
    %101 = vector.multi_reduction <add>, %100, %cst_28 [1] : vector<1x256xf32> to vector<1xf32>
    %102 = vector.shape_cast %101 : vector<1xf32> to vector<1x1xf32>
    %103 = vector.extract_strided_slice %15 {offsets = [0, 0], sizes = [1, 1], strides = [1, 1]} : vector<1x2xf32> to vector<1x1xf32>
    %104 = arith.addf %102, %103 : vector<1x1xf32>
    %105 = arith.negf %104 : vector<1x1xf32>
    %106 = math.exp %105 : vector<1x1xf32>
    %cst_29 = arith.constant 1.000000e+00 : f32
    %107 = vector.broadcast %cst_29 : f32 to vector<1x1xf32>
    %108 = arith.addf %107, %106 : vector<1x1xf32>
    %109 = arith.divf %107, %108 : vector<1x1xf32>
    %110 = arith.mulf %104, %109 : vector<1x1xf32>
    %111 = vector.extract_strided_slice %16 {offsets = [0, 0], sizes = [1, 256], strides = [1, 1]} : vector<2x256xf32> to vector<1x256xf32>
    %112 = vector.broadcast %110 : vector<1x1xf32> to vector<1x256xf32>
    %113 = arith.mulf %112, %111 : vector<1x256xf32>
    %114 = arith.addf %17, %113 : vector<1x256xf32>
    %115 = vector.extract_strided_slice %14 {offsets = [1, 0], sizes = [1, 256], strides = [1, 1]} : vector<2x256xf32> to vector<1x256xf32>
    %116 = arith.mulf %98, %115 : vector<1x256xf32>
    %cst_30 = arith.constant dense<0.000000e+00> : vector<1xf32>
    %117 = vector.multi_reduction <add>, %116, %cst_30 [1] : vector<1x256xf32> to vector<1xf32>
    %118 = vector.shape_cast %117 : vector<1xf32> to vector<1x1xf32>
    %119 = vector.extract_strided_slice %15 {offsets = [0, 1], sizes = [1, 1], strides = [1, 1]} : vector<1x2xf32> to vector<1x1xf32>
    %120 = arith.addf %118, %119 : vector<1x1xf32>
    %121 = arith.negf %120 : vector<1x1xf32>
    %122 = math.exp %121 : vector<1x1xf32>
    %cst_31 = arith.constant 1.000000e+00 : f32
    %123 = vector.broadcast %cst_31 : f32 to vector<1x1xf32>
    %124 = arith.addf %123, %122 : vector<1x1xf32>
    %125 = arith.divf %123, %124 : vector<1x1xf32>
    %126 = arith.mulf %120, %125 : vector<1x1xf32>
    %127 = vector.extract_strided_slice %16 {offsets = [1, 0], sizes = [1, 256], strides = [1, 1]} : vector<2x256xf32> to vector<1x256xf32>
    %128 = vector.broadcast %126 : vector<1x1xf32> to vector<1x256xf32>
    %129 = arith.mulf %128, %127 : vector<1x256xf32>
    %130 = arith.addf %114, %129 : vector<1x256xf32>
    %131 = arith.negf %130 : vector<1x256xf32>
    %132 = math.exp %131 : vector<1x256xf32>
    %cst_32 = arith.constant 1.000000e+00 : f32
    %133 = vector.broadcast %cst_32 : f32 to vector<1x256xf32>
    %134 = arith.addf %133, %132 : vector<1x256xf32>
    %135 = arith.divf %133, %134 : vector<1x256xf32>
    %136 = vector.broadcast %135 : vector<1x256xf32> to vector<16x256xf32>
    %137 = arith.mulf %96, %136 : vector<16x256xf32>
    %138 = vector.extract_strided_slice %11 {offsets = [16, 0], sizes = [16, 256], strides = [1, 1]} : vector<32x256xf32> to vector<16x256xf32>
    %c1_i32_33 = arith.constant 1 : i32
    %139 = tpu.dynamic_rotate %138 by %c1_i32_33 dim 0 : vector<16x256xf32>, i32 -> vector<16x256xf32>
    %c1_i32_34 = arith.constant 1 : i32
    %140 = vector.broadcast %c1_i32_34 : i32 to vector<16x256xi32>
    %141 = arith.cmpi sge, %18, %140 : vector<16x256xi32>
    %cst_35 = arith.constant 0.000000e+00 : f32
    %142 = vector.broadcast %cst_35 : f32 to vector<16x256xf32>
    %143 = arith.select %141, %139, %142 : vector<16x256xi1>, vector<16x256xf32>
    %c15_i32_36 = arith.constant 15 : i32
    %144 = tpu.dynamic_rotate %138 by %c15_i32_36 dim 0 : vector<16x256xf32>, i32 -> vector<16x256xf32>
    %c15_i32_37 = arith.constant 15 : i32
    %145 = vector.broadcast %c15_i32_37 : i32 to vector<16x256xi32>
    %146 = arith.cmpi slt, %18, %145 : vector<16x256xi32>
    %cst_38 = arith.constant 0.000000e+00 : f32
    %147 = vector.broadcast %cst_38 : f32 to vector<16x256xf32>
    %148 = arith.select %146, %144, %147 : vector<16x256xi1>, vector<16x256xf32>
    %149 = vector.extract_strided_slice %12 {offsets = [4, 0], sizes = [1, 256], strides = [1, 1]} : vector<9x256xf32> to vector<1x256xf32>
    %150 = vector.shape_cast %149 : vector<1x256xf32> to vector<256xf32>
    %151 = vector.shape_cast %150 : vector<256xf32> to vector<1x256xf32>
    %152 = vector.broadcast %151 : vector<1x256xf32> to vector<16x256xf32>
    %153 = arith.mulf %138, %152 : vector<16x256xf32>
    %c16_i32_39 = arith.constant 16 : i32
    %154 = tpu.dynamic_rotate %143 by %c16_i32_39 dim 1 : vector<16x256xf32>, i32 -> vector<16x256xf32>
    %155 = vector.extract_strided_slice %12 {offsets = [0, 0], sizes = [1, 256], strides = [1, 1]} : vector<9x256xf32> to vector<1x256xf32>
    %156 = vector.shape_cast %155 : vector<1x256xf32> to vector<256xf32>
    %157 = vector.shape_cast %156 : vector<256xf32> to vector<1x256xf32>
    %158 = vector.broadcast %157 : vector<1x256xf32> to vector<16x256xf32>
    %159 = arith.mulf %154, %158 : vector<16x256xf32>
    %160 = arith.addf %153, %159 : vector<16x256xf32>
    %161 = vector.extract_strided_slice %12 {offsets = [1, 0], sizes = [1, 256], strides = [1, 1]} : vector<9x256xf32> to vector<1x256xf32>
    %162 = vector.shape_cast %161 : vector<1x256xf32> to vector<256xf32>
    %163 = vector.shape_cast %162 : vector<256xf32> to vector<1x256xf32>
    %164 = vector.broadcast %163 : vector<1x256xf32> to vector<16x256xf32>
    %165 = arith.mulf %143, %164 : vector<16x256xf32>
    %166 = arith.addf %160, %165 : vector<16x256xf32>
    %c240_i32_40 = arith.constant 240 : i32
    %167 = tpu.dynamic_rotate %143 by %c240_i32_40 dim 1 : vector<16x256xf32>, i32 -> vector<16x256xf32>
    %168 = vector.extract_strided_slice %12 {offsets = [2, 0], sizes = [1, 256], strides = [1, 1]} : vector<9x256xf32> to vector<1x256xf32>
    %169 = vector.shape_cast %168 : vector<1x256xf32> to vector<256xf32>
    %170 = vector.shape_cast %169 : vector<256xf32> to vector<1x256xf32>
    %171 = vector.broadcast %170 : vector<1x256xf32> to vector<16x256xf32>
    %172 = arith.mulf %167, %171 : vector<16x256xf32>
    %173 = arith.addf %166, %172 : vector<16x256xf32>
    %c16_i32_41 = arith.constant 16 : i32
    %174 = tpu.dynamic_rotate %138 by %c16_i32_41 dim 1 : vector<16x256xf32>, i32 -> vector<16x256xf32>
    %175 = vector.extract_strided_slice %12 {offsets = [3, 0], sizes = [1, 256], strides = [1, 1]} : vector<9x256xf32> to vector<1x256xf32>
    %176 = vector.shape_cast %175 : vector<1x256xf32> to vector<256xf32>
    %177 = vector.shape_cast %176 : vector<256xf32> to vector<1x256xf32>
    %178 = vector.broadcast %177 : vector<1x256xf32> to vector<16x256xf32>
    %179 = arith.mulf %174, %178 : vector<16x256xf32>
    %180 = arith.addf %173, %179 : vector<16x256xf32>
    %c240_i32_42 = arith.constant 240 : i32
    %181 = tpu.dynamic_rotate %138 by %c240_i32_42 dim 1 : vector<16x256xf32>, i32 -> vector<16x256xf32>
    %182 = vector.extract_strided_slice %12 {offsets = [5, 0], sizes = [1, 256], strides = [1, 1]} : vector<9x256xf32> to vector<1x256xf32>
    %183 = vector.shape_cast %182 : vector<1x256xf32> to vector<256xf32>
    %184 = vector.shape_cast %183 : vector<256xf32> to vector<1x256xf32>
    %185 = vector.broadcast %184 : vector<1x256xf32> to vector<16x256xf32>
    %186 = arith.mulf %181, %185 : vector<16x256xf32>
    %187 = arith.addf %180, %186 : vector<16x256xf32>
    %c16_i32_43 = arith.constant 16 : i32
    %188 = tpu.dynamic_rotate %148 by %c16_i32_43 dim 1 : vector<16x256xf32>, i32 -> vector<16x256xf32>
    %189 = vector.extract_strided_slice %12 {offsets = [6, 0], sizes = [1, 256], strides = [1, 1]} : vector<9x256xf32> to vector<1x256xf32>
    %190 = vector.shape_cast %189 : vector<1x256xf32> to vector<256xf32>
    %191 = vector.shape_cast %190 : vector<256xf32> to vector<1x256xf32>
    %192 = vector.broadcast %191 : vector<1x256xf32> to vector<16x256xf32>
    %193 = arith.mulf %188, %192 : vector<16x256xf32>
    %194 = arith.addf %187, %193 : vector<16x256xf32>
    %195 = vector.extract_strided_slice %12 {offsets = [7, 0], sizes = [1, 256], strides = [1, 1]} : vector<9x256xf32> to vector<1x256xf32>
    %196 = vector.shape_cast %195 : vector<1x256xf32> to vector<256xf32>
    %197 = vector.shape_cast %196 : vector<256xf32> to vector<1x256xf32>
    %198 = vector.broadcast %197 : vector<1x256xf32> to vector<16x256xf32>
    %199 = arith.mulf %148, %198 : vector<16x256xf32>
    %200 = arith.addf %194, %199 : vector<16x256xf32>
    %c240_i32_44 = arith.constant 240 : i32
    %201 = tpu.dynamic_rotate %148 by %c240_i32_44 dim 1 : vector<16x256xf32>, i32 -> vector<16x256xf32>
    %202 = vector.extract_strided_slice %12 {offsets = [8, 0], sizes = [1, 256], strides = [1, 1]} : vector<9x256xf32> to vector<1x256xf32>
    %203 = vector.shape_cast %202 : vector<1x256xf32> to vector<256xf32>
    %204 = vector.shape_cast %203 : vector<256xf32> to vector<1x256xf32>
    %205 = vector.broadcast %204 : vector<1x256xf32> to vector<16x256xf32>
    %206 = arith.mulf %201, %205 : vector<16x256xf32>
    %207 = arith.addf %200, %206 : vector<16x256xf32>
    %208 = vector.broadcast %13 : vector<1x256xf32> to vector<16x256xf32>
    %209 = arith.addf %207, %208 : vector<16x256xf32>
    %210 = arith.negf %209 : vector<16x256xf32>
    %211 = math.exp %210 : vector<16x256xf32>
    %cst_45 = arith.constant 1.000000e+00 : f32
    %212 = vector.broadcast %cst_45 : f32 to vector<16x256xf32>
    %213 = arith.addf %212, %211 : vector<16x256xf32>
    %214 = arith.divf %212, %213 : vector<16x256xf32>
    %215 = arith.mulf %209, %214 : vector<16x256xf32>
    %cst_46 = arith.constant dense<0.000000e+00> : vector<256xf32>
    %216 = vector.multi_reduction <add>, %215, %cst_46 [0] : vector<16x256xf32> to vector<256xf32>
    %217 = vector.shape_cast %216 : vector<256xf32> to vector<1x256xf32>
    %218 = vector.extract_strided_slice %14 {offsets = [0, 0], sizes = [1, 256], strides = [1, 1]} : vector<2x256xf32> to vector<1x256xf32>
    %219 = arith.mulf %217, %218 : vector<1x256xf32>
    %cst_47 = arith.constant dense<0.000000e+00> : vector<1xf32>
    %220 = vector.multi_reduction <add>, %219, %cst_47 [1] : vector<1x256xf32> to vector<1xf32>
    %221 = vector.shape_cast %220 : vector<1xf32> to vector<1x1xf32>
    %222 = vector.extract_strided_slice %15 {offsets = [0, 0], sizes = [1, 1], strides = [1, 1]} : vector<1x2xf32> to vector<1x1xf32>
    %223 = arith.addf %221, %222 : vector<1x1xf32>
    %224 = arith.negf %223 : vector<1x1xf32>
    %225 = math.exp %224 : vector<1x1xf32>
    %cst_48 = arith.constant 1.000000e+00 : f32
    %226 = vector.broadcast %cst_48 : f32 to vector<1x1xf32>
    %227 = arith.addf %226, %225 : vector<1x1xf32>
    %228 = arith.divf %226, %227 : vector<1x1xf32>
    %229 = arith.mulf %223, %228 : vector<1x1xf32>
    %230 = vector.extract_strided_slice %16 {offsets = [0, 0], sizes = [1, 256], strides = [1, 1]} : vector<2x256xf32> to vector<1x256xf32>
    %231 = vector.broadcast %229 : vector<1x1xf32> to vector<1x256xf32>
    %232 = arith.mulf %231, %230 : vector<1x256xf32>
    %233 = arith.addf %17, %232 : vector<1x256xf32>
    %234 = vector.extract_strided_slice %14 {offsets = [1, 0], sizes = [1, 256], strides = [1, 1]} : vector<2x256xf32> to vector<1x256xf32>
    %235 = arith.mulf %217, %234 : vector<1x256xf32>
    %cst_49 = arith.constant dense<0.000000e+00> : vector<1xf32>
    %236 = vector.multi_reduction <add>, %235, %cst_49 [1] : vector<1x256xf32> to vector<1xf32>
    %237 = vector.shape_cast %236 : vector<1xf32> to vector<1x1xf32>
    %238 = vector.extract_strided_slice %15 {offsets = [0, 1], sizes = [1, 1], strides = [1, 1]} : vector<1x2xf32> to vector<1x1xf32>
    %239 = arith.addf %237, %238 : vector<1x1xf32>
    %240 = arith.negf %239 : vector<1x1xf32>
    %241 = math.exp %240 : vector<1x1xf32>
    %cst_50 = arith.constant 1.000000e+00 : f32
    %242 = vector.broadcast %cst_50 : f32 to vector<1x1xf32>
    %243 = arith.addf %242, %241 : vector<1x1xf32>
    %244 = arith.divf %242, %243 : vector<1x1xf32>
    %245 = arith.mulf %239, %244 : vector<1x1xf32>
    %246 = vector.extract_strided_slice %16 {offsets = [1, 0], sizes = [1, 256], strides = [1, 1]} : vector<2x256xf32> to vector<1x256xf32>
    %247 = vector.broadcast %245 : vector<1x1xf32> to vector<1x256xf32>
    %248 = arith.mulf %247, %246 : vector<1x256xf32>
    %249 = arith.addf %233, %248 : vector<1x256xf32>
    %250 = arith.negf %249 : vector<1x256xf32>
    %251 = math.exp %250 : vector<1x256xf32>
    %cst_51 = arith.constant 1.000000e+00 : f32
    %252 = vector.broadcast %cst_51 : f32 to vector<1x256xf32>
    %253 = arith.addf %252, %251 : vector<1x256xf32>
    %254 = arith.divf %252, %253 : vector<1x256xf32>
    %255 = vector.broadcast %254 : vector<1x256xf32> to vector<16x256xf32>
    %256 = arith.mulf %215, %255 : vector<16x256xf32>
    %257 = tpu.concatenate %137, %256 in 0 : vector<16x256xf32>, vector<16x256xf32> -> vector<32x256xf32>
    %c0_52 = arith.constant 0 : index
    %c0_53 = arith.constant 0 : index
    %258 = vector.load %arg10[%c0_52, %c0_53] : memref<256x128xf32, #tpu.memory_space<vmem>>, vector<256x128xf32>
    %cst_54 = arith.constant dense<0.000000e+00> : vector<32x128xf32>
    %259 = tpu.matmul %257, %258, %cst_54 {dimension_numbers = #tpu.dot_dimension_numbers<[1], [0], [0], [1], [0, 0, 1, 1], [], []>} : vector<32x256xf32>, vector<256x128xf32>, vector<32x128xf32> -> vector<32x128xf32>
    %c0_55 = arith.constant 0 : index
    %c0_56 = arith.constant 0 : index
    %260 = vector.load %arg11[%c0_55, %c0_56] : memref<1x128xf32, #tpu.memory_space<vmem>>, vector<1x128xf32>
    %261 = vector.broadcast %260 : vector<1x128xf32> to vector<32x128xf32>
    %262 = arith.addf %259, %261 : vector<32x128xf32>
    %263 = arith.addf %262, %0 : vector<32x128xf32>
    %c0_57 = arith.constant 0 : index
    %c0_58 = arith.constant 0 : index
    %264 = vector.load %arg12[%c0_57, %c0_58] : memref<32x128xf32, #tpu.memory_space<vmem>>, vector<32x128xf32>
    tpu.vector_store %arg12[%c0_57, %c0_58], %263 {strides = array<i32>} : memref<32x128xf32, #tpu.memory_space<vmem>>, vector<32x128xf32>,
    return
  }
  func.func @transform_0(%arg0: i32) -> (i32, i32) {
    %c0_i32 = arith.constant 0 : i32
    %c0_i32_0 = arith.constant 0 : i32
    return %arg0, %c0_i32 : i32, i32
  }
  func.func @transform_1(%arg0: i32) -> (i32, i32) {
    %c0_i32 = arith.constant 0 : i32
    %c0_i32_0 = arith.constant 0 : i32
    %c0_i32_1 = arith.constant 0 : i32
    return %c0_i32, %c0_i32_0 : i32, i32
  }
  func.func @transform_2(%arg0: i32) -> (i32, i32) {
    %c0_i32 = arith.constant 0 : i32
    %c0_i32_0 = arith.constant 0 : i32
    %c0_i32_1 = arith.constant 0 : i32
    return %c0_i32, %c0_i32_0 : i32, i32
  }
  func.func @transform_3(%arg0: i32) -> (i32, i32) {
    %c0_i32 = arith.constant 0 : i32
    %c0_i32_0 = arith.constant 0 : i32
    %c0_i32_1 = arith.constant 0 : i32
    return %c0_i32, %c0_i32_0 : i32, i32
  }
  func.func @transform_4(%arg0: i32) -> (i32, i32) {
    %c0_i32 = arith.constant 0 : i32
    %c0_i32_0 = arith.constant 0 : i32
    %c0_i32_1 = arith.constant 0 : i32
    return %c0_i32, %c0_i32_0 : i32, i32
  }
  func.func @transform_5(%arg0: i32) -> (i32, i32) {
    %c0_i32 = arith.constant 0 : i32
    %c0_i32_0 = arith.constant 0 : i32
    %c0_i32_1 = arith.constant 0 : i32
    return %c0_i32, %c0_i32_0 : i32, i32
  }
  func.func @transform_6(%arg0: i32) -> (i32, i32) {
    %c0_i32 = arith.constant 0 : i32
    %c0_i32_0 = arith.constant 0 : i32
    %c0_i32_1 = arith.constant 0 : i32
    return %c0_i32, %c0_i32_0 : i32, i32
  }
  func.func @transform_7(%arg0: i32) -> (i32, i32) {
    %c0_i32 = arith.constant 0 : i32
    %c0_i32_0 = arith.constant 0 : i32
    %c0_i32_1 = arith.constant 0 : i32
    return %c0_i32, %c0_i32_0 : i32, i32
  }
  func.func @transform_8(%arg0: i32) -> (i32, i32) {
    %c0_i32 = arith.constant 0 : i32
    %c0_i32_0 = arith.constant 0 : i32
    %c0_i32_1 = arith.constant 0 : i32
    return %c0_i32, %c0_i32_0 : i32, i32
  }
  func.func @transform_9(%arg0: i32) -> (i32, i32) {
    %c0_i32 = arith.constant 0 : i32
    %c0_i32_0 = arith.constant 0 : i32
    %c0_i32_1 = arith.constant 0 : i32
    return %c0_i32, %c0_i32_0 : i32, i32
  }
  func.func @transform_10(%arg0: i32) -> (i32, i32) {
    %c0_i32 = arith.constant 0 : i32
    %c0_i32_0 = arith.constant 0 : i32
    %c0_i32_1 = arith.constant 0 : i32
    return %c0_i32, %c0_i32_0 : i32, i32
  }
  func.func @transform_11(%arg0: i32) -> (i32, i32) {
    %c0_i32 = arith.constant 0 : i32
    %c0_i32_0 = arith.constant 0 : i32
    return %arg0, %c0_i32 : i32, i32
  }
}

</mosaic_0001>

<llo_original>
// kernel: mbconv_forward.1
$region0: #{mbconv_forward.1}
  #allocation0 [shape = 'u32[]', space=smem, size = 0x4, offset = 0x4, fixed_abs, tag = 'smem constant byte address 0x4 - core index']
  #allocation1 [shape = 'u32[144,128]{1,0:T(1,128)}', space=vmem, size = 0x12000, scoped, tag = 'internal scratch']
  %s0 = inlined_call_operand.vmem [shape: f32[32,128], index: 0, kind: input, shape index: {}]
  %s1 = inlined_call_operand.vmem [shape: f32[128,256], index: 1, kind: input, shape index: {}]
  %s2 = inlined_call_operand.vmem [shape: f32[1,256], index: 2, kind: input, shape index: {}]
  %s3 = inlined_call_operand.vmem [shape: f32[9,256], index: 3, kind: input, shape index: {}]
  %s4 = inlined_call_operand.vmem [shape: f32[1,256], index: 4, kind: input, shape index: {}]
  %s5 = inlined_call_operand.vmem [shape: f32[2,256], index: 5, kind: input, shape index: {}]
  %s6 = inlined_call_operand.vmem [shape: f32[1,2], index: 6, kind: input, shape index: {}]
  %s7 = inlined_call_operand.vmem [shape: f32[2,256], index: 7, kind: input, shape index: {}]
  %s8 = inlined_call_operand.vmem [shape: f32[1,256], index: 8, kind: input, shape index: {}]
  %s9 = inlined_call_operand.vmem [shape: f32[256,128], index: 9, kind: input, shape index: {}]
  %s10 = inlined_call_operand.vmem [shape: f32[1,128], index: 10, kind: input, shape index: {}]
  %s11 = inlined_call_operand.vmem [shape: f32[32,128], index: 11, kind: output, shape index: {}]
  %s12 = sld [smem:[#allocation0]]
  $region54: #{mbconv_forward.1} parent=0
    _
  %s14 = ssub.s32 1, %s12
  %s15 = scalar_select 0, %s14, %s12
  // Predicated region
  $region2: #{mbconv_forward.1} parent=0 // pred_check
    _
  $region3: #{mbconv_forward.1} parent=0 // pred_check_branch
    %17 = sbr.rel (0) target = $region5
  $region4: #{mbconv_forward.1} parent=0 // pred_region
    _
  $region5: #{mbconv_forward.1} parent=0 // pred_fallthru
    _
  // Predicated region
  $region6: #{mbconv_forward.1} parent=0 // pred_check
    _
  $region7: #{mbconv_forward.1} parent=0 // pred_check_branch
    %19 = sbr.rel (0) target = $region9
  $region8: #{mbconv_forward.1} parent=0 // pred_region
    _
  $region9: #{mbconv_forward.1} parent=0 // pred_fallthru
    _
  // Predicated region
  $region10: #{mbconv_forward.1} parent=0 // pred_check
    _
  $region11: #{mbconv_forward.1} parent=0 // pred_check_branch
    %21 = sbr.rel (0) target = $region13
  $region12: #{mbconv_forward.1} parent=0 // pred_region
    _
  $region13: #{mbconv_forward.1} parent=0 // pred_fallthru
    _
  // Predicated region
  $region14: #{mbconv_forward.1} parent=0 // pred_check
    _
  $region15: #{mbconv_forward.1} parent=0 // pred_check_branch
    %23 = sbr.rel (0) target = $region17
  $region16: #{mbconv_forward.1} parent=0 // pred_region
    _
  $region17: #{mbconv_forward.1} parent=0 // pred_fallthru
    _
  // Predicated region
  $region18: #{mbconv_forward.1} parent=0 // pred_check
    _
  $region19: #{mbconv_forward.1} parent=0 // pred_check_branch
    %25 = sbr.rel (0) target = $region21
  $region20: #{mbconv_forward.1} parent=0 // pred_region
    _
  $region21: #{mbconv_forward.1} parent=0 // pred_fallthru
    _
  // Predicated region
  $region22: #{mbconv_forward.1} parent=0 // pred_check
    _
  $region23: #{mbconv_forward.1} parent=0 // pred_check_branch
    %27 = sbr.rel (0) target = $region25
  $region24: #{mbconv_forward.1} parent=0 // pred_region
    _
  $region25: #{mbconv_forward.1} parent=0 // pred_fallthru
    _
  // Predicated region
  $region26: #{mbconv_forward.1} parent=0 // pred_check
    _
  $region27: #{mbconv_forward.1} parent=0 // pred_check_branch
    %29 = sbr.rel (0) target = $region29
  $region28: #{mbconv_forward.1} parent=0 // pred_region
    _
  $region29: #{mbconv_forward.1} parent=0 // pred_fallthru
    _
  // Predicated region
  $region30: #{mbconv_forward.1} parent=0 // pred_check
    _
  $region31: #{mbconv_forward.1} parent=0 // pred_check_branch
    %31 = sbr.rel (0) target = $region33
  $region32: #{mbconv_forward.1} parent=0 // pred_region
    _
  $region33: #{mbconv_forward.1} parent=0 // pred_fallthru
    _
  // Predicated region
  $region34: #{mbconv_forward.1} parent=0 // pred_check
    _
  $region35: #{mbconv_forward.1} parent=0 // pred_check_branch
    %33 = sbr.rel (0) target = $region37
  $region36: #{mbconv_forward.1} parent=0 // pred_region
    _
  $region37: #{mbconv_forward.1} parent=0 // pred_fallthru
    _
  // Predicated region
  $region38: #{mbconv_forward.1} parent=0 // pred_check
    _
  $region39: #{mbconv_forward.1} parent=0 // pred_check_branch
    %35 = sbr.rel (0) target = $region41
  $region40: #{mbconv_forward.1} parent=0 // pred_region
    _
  $region41: #{mbconv_forward.1} parent=0 // pred_fallthru
    _
  // Predicated region
  $region42: #{mbconv_forward.1} parent=0 // pred_check
    _
  $region43: #{mbconv_forward.1} parent=0 // pred_check_branch
    %37 = sbr.rel (0) target = $region45
  $region44: #{mbconv_forward.1} parent=0 // pred_region
    _
  $region45: #{mbconv_forward.1} parent=0 // pred_fallthru
    _
  %v38 = vld [vmem:[%s0] sm:$0xff]
  %v39 = vld [vmem:[%s0 + $0x8] sm:$0xff]
  %v40 = vld [vmem:[%s0 + $0x10] sm:$0xff]
  %v41 = vld [vmem:[%s0 + $0x18] sm:$0xff]
  %v42 = vld [vmem:[%s1] sm:$0xff]
  %v43 = vld [vmem:[%s1 + $0x8] sm:$0xff]
  %v44 = vld [vmem:[%s1 + $0x10] sm:$0xff]
  %v45 = vld [vmem:[%s1 + $0x18] sm:$0xff]
  %v46 = vld [vmem:[%s1 + $0x20] sm:$0xff]
  %v47 = vld [vmem:[%s1 + $0x28] sm:$0xff]
  %v48 = vld [vmem:[%s1 + $0x30] sm:$0xff]
  %v49 = vld [vmem:[%s1 + $0x38] sm:$0xff]
  %v50 = vld [vmem:[%s1 + $0x40] sm:$0xff]
  %v51 = vld [vmem:[%s1 + $0x48] sm:$0xff]
  %v52 = vld [vmem:[%s1 + $0x50] sm:$0xff]
  %v53 = vld [vmem:[%s1 + $0x58] sm:$0xff]
  %v54 = vld [vmem:[%s1 + $0x60] sm:$0xff]
  %v55 = vld [vmem:[%s1 + $0x68] sm:$0xff]
  %v56 = vld [vmem:[%s1 + $0x70] sm:$0xff]
  %v57 = vld [vmem:[%s1 + $0x78] sm:$0xff]
  %v58 = vld [vmem:[%s1 + $0x80] sm:$0xff]
  %v59 = vld [vmem:[%s1 + $0x88] sm:$0xff]
  %v60 = vld [vmem:[%s1 + $0x90] sm:$0xff]
  %v61 = vld [vmem:[%s1 + $0x98] sm:$0xff]
  %v62 = vld [vmem:[%s1 + $0xa0] sm:$0xff]
  %v63 = vld [vmem:[%s1 + $0xa8] sm:$0xff]
  %v64 = vld [vmem:[%s1 + $0xb0] sm:$0xff]
  %v65 = vld [vmem:[%s1 + $0xb8] sm:$0xff]
  %v66 = vld [vmem:[%s1 + $0xc0] sm:$0xff]
  %v67 = vld [vmem:[%s1 + $0xc8] sm:$0xff]
  %v68 = vld [vmem:[%s1 + $0xd0] sm:$0xff]
  %v69 = vld [vmem:[%s1 + $0xd8] sm:$0xff]
  %v70 = vld [vmem:[%s1 + $0xe0] sm:$0xff]
  %v71 = vld [vmem:[%s1 + $0xe8] sm:$0xff]
  %v72 = vld [vmem:[%s1 + $0xf0] sm:$0xff]
  %v73 = vld [vmem:[%s1 + $0xf8] sm:$0xff]
  %v74 = vld [vmem:[%s2] sm:$0x3]
  %v76 = vlaneseq
  %v77 = vshrl.u32 %v76, 7
  %v78 = vsub.s32 0, %v77
  %v79 = vrot.slane %v74, %v78
  %v80 = vlaneseq
  %v81 = vshrl.u32 %v80, 7
  %v82 = vsub.s32 1, %v81
  %v83 = vrot.slane %v74, %v82
  %86 = vmatprep.subr.mxu0 %v43
  %87 = vmatpush1.msra.mxu0 %v42
  %88 = vmatprep.subr.mxu0 %v45
  %89 = vmatpush1.msra.mxu0 %v44
  %90 = vmatprep.subr.mxu0 %v47
  %91 = vmatpush1.msra.mxu0 %v46
  %92 = vmatprep.subr.mxu0 %v49
  %93 = vmatpush1.msra.mxu0 %v48
  %94 = vmatprep.subr.mxu0 %v51
  %95 = vmatpush1.msra.mxu0 %v50
  %96 = vmatprep.subr.mxu0 %v53
  %97 = vmatpush1.msra.mxu0 %v52
  %98 = vmatprep.subr.mxu0 %v55
  %99 = vmatpush1.msra.mxu0 %v54
  %100 = vmatprep.subr.mxu0 %v57
  %101 = vmatpush1.msra.mxu0 %v56
  %102 = vmatprep.subr.mxu0 %v59
  %103 = vmatpush1.msra.mxu0 %v58
  %104 = vmatprep.subr.mxu0 %v61
  %105 = vmatpush1.msra.mxu0 %v60
  %106 = vmatprep.subr.mxu0 %v63
  %107 = vmatpush1.msra.mxu0 %v62
  %108 = vmatprep.subr.mxu0 %v65
  %109 = vmatpush1.msra.mxu0 %v64
  %110 = vmatprep.subr.mxu0 %v67
  %111 = vmatpush1.msra.mxu0 %v66
  %112 = vmatprep.subr.mxu0 %v69
  %113 = vmatpush1.msra.mxu0 %v68
  %114 = vmatprep.subr.mxu0 %v71
  %115 = vmatpush1.msra.mxu0 %v70
  %116 = vmatprep.subr.mxu0 %v73
  %117 = vmatpush1.msra.mxu0 %v72
  %118 = vmatprep.subr.mxu0 0.0
  %119 = vmatpush1.msra.mxu0 0.0
  %120 = vmatprep.subr.mxu0 0.0
  %121 = vmatpush1.msra.mxu0 0.0
  %122 = vmatprep.subr.mxu0 0.0
  %123 = vmatpush1.msra.mxu0 0.0
  %124 = vmatprep.subr.mxu0 0.0
  %125 = vmatpush1.msra.mxu0 0.0
  %126 = vmatprep.subr.mxu0 0.0
  %127 = vmatpush1.msra.mxu0 0.0
  %128 = vmatprep.subr.mxu0 0.0
  %129 = vmatpush1.msra.mxu0 0.0
  %130 = vmatprep.subr.mxu0 0.0
  %131 = vmatpush1.msra.mxu0 0.0
  %132 = vmatprep.subr.mxu0 0.0
  %133 = vmatpush1.msra.mxu0 0.0
  %134 = vmatprep.subr.mxu0 0.0
  %135 = vmatpush1.msra.mxu0 0.0
  %136 = vmatprep.subr.mxu0 0.0
  %137 = vmatpush1.msra.mxu0 0.0
  %138 = vmatprep.subr.mxu0 0.0
  %139 = vmatpush1.msra.mxu0 0.0
  %140 = vmatprep.subr.mxu0 0.0
  %141 = vmatpush1.msra.mxu0 0.0
  %142 = vmatprep.subr.mxu0 0.0
  %143 = vmatpush1.msra.mxu0 0.0
  %144 = vmatprep.subr.mxu0 0.0
  %145 = vmatpush1.msra.mxu0 0.0
  %146 = vmatprep.subr.mxu0 0.0
  %147 = vmatpush1.msra.mxu0 0.0
  %148 = vmatprep.subr.mxu0 0.0
  %149 = vmatpush1.msra.mxu0 0.0
  %150 = vmatprep.mubr.f32.mxu0 0.0
  %151 = vmatmul.mubr.f32.gmra.mrb[0].mxu0 %v38
  %v152 = vpop.f32.mrb[0].mxu0
  %v153 = vadd.f32 %v79, %v152
  %v154 = vpop.f32.mrb[0].mxu0
  %v155 = vadd.f32 %v83, %v154
  %156 = vmatprep.mubr.f32.mxu0 0.0
  %157 = vmatmul.mubr.f32.gmra.mrb[0].mxu0 %v39
  %v158 = vpop.f32.mrb[0].mxu0
  %v159 = vadd.f32 %v79, %v158
  %v160 = vpop.f32.mrb[0].mxu0
  %v161 = vadd.f32 %v83, %v160
  %162 = vmatprep.mubr.f32.mxu0 0.0
  %163 = vmatmul.mubr.f32.gmra.mrb[0].mxu0 %v40
  %v164 = vpop.f32.mrb[0].mxu0
  %v165 = vadd.f32 %v79, %v164
  %v166 = vpop.f32.mrb[0].mxu0
  %v167 = vadd.f32 %v83, %v166
  %168 = vmatprep.mubr.f32.mxu0 0.0
  %169 = vmatmul.mubr.f32.gmra.mrb[0].mxu0 %v41
  %v170 = vpop.f32.mrb[0].mxu0
  %v171 = vadd.f32 %v79, %v170
  %v172 = vpop.f32.mrb[0].mxu0
  %v173 = vadd.f32 %v83, %v172
  %174 = vdwg.mxu0
  %v175 = vxor.u32 %v153, 2147483648
  %v176 = vxor.u32 %v155, 2147483648
  %v177 = vxor.u32 %v159, 2147483648
  %v178 = vxor.u32 %v161, 2147483648
  %v179 = vxor.u32 %v165, 2147483648
  %v180 = vxor.u32 %v167, 2147483648
  %v181 = vxor.u32 %v171, 2147483648
  %v182 = vxor.u32 %v173, 2147483648
  %v183 = vmul.f32 %v175, 1.442695
  %v184 = vpow.pop %v183
  %v185 = vmul.f32 %v176, 1.442695
  %v186 = vpow.pop %v185
  %v187 = vmul.f32 %v177, 1.442695
  %v188 = vpow.pop %v187
  %v189 = vmul.f32 %v178, 1.442695
  %v190 = vpow.pop %v189
  %v191 = vmul.f32 %v179, 1.442695
  %v192 = vpow.pop %v191
  %v193 = vmul.f32 %v180, 1.442695
  %v194 = vpow.pop %v193
  %v195 = vmul.f32 %v181, 1.442695
  %v196 = vpow.pop %v195
  %v197 = vmul.f32 %v182, 1.442695
  %v198 = vpow.pop %v197
  %v199 = vadd.f32 %v184, 1.0
  %v200 = vadd.f32 %v186, 1.0
  %v201 = vadd.f32 %v188, 1.0
  %v202 = vadd.f32 %v190, 1.0
  %v203 = vadd.f32 %v192, 1.0
  %v204 = vadd.f32 %v194, 1.0
  %v205 = vadd.f32 %v196, 1.0
  %v206 = vadd.f32 %v198, 1.0
  %v207 = vrcp.pop %v199
  %v208 = vmul.f32 1.0, %v207
  %v209 = vrcp.pop %v200
  %v210 = vmul.f32 1.0, %v209
  %v211 = vrcp.pop %v201
  %v212 = vmul.f32 1.0, %v211
  %v213 = vrcp.pop %v202
  %v214 = vmul.f32 1.0, %v213
  %v215 = vrcp.pop %v203
  %v216 = vmul.f32 1.0, %v215
  %v217 = vrcp.pop %v204
  %v218 = vmul.f32 1.0, %v217
  %v219 = vrcp.pop %v205
  %v220 = vmul.f32 1.0, %v219
  %v221 = vrcp.pop %v206
  %v222 = vmul.f32 1.0, %v221
  %v223 = vmul.f32 %v153, %v208
  %v224 = vmul.f32 %v155, %v210
  %v225 = vmul.f32 %v159, %v212
  %v226 = vmul.f32 %v161, %v214
  %v227 = vmul.f32 %v165, %v216
  %v228 = vmul.f32 %v167, %v218
  %v229 = vmul.f32 %v171, %v220
  %v230 = vmul.f32 %v173, %v222
  %v231 = vld [vmem:[%s3] sm:$0xff]
  %v232 = vld [vmem:[%s3 + $0x8] sm:$0xff]
  %v233 = vld [vmem:[%s3 + $0x10] sm:$0x1]
  %v234 = vld [vmem:[%s3 + $0x18] sm:$0x1]
  %v235 = vld [vmem:[%s4] sm:$0x3]
  %v236 = vld [vmem:[%s5] sm:$0xf]
  %v237 = vld [vmem:[%s6] sm:$0x1]
  %v238 = vld [vmem:[%s7] sm:$0xf]
  %v239 = vld [vmem:[%s8] sm:$0x3]
  %v240 = vlaneseq
  %v241 = vshrl.u32 %v240, 7
  %v242 = vadd.s32 %v241, 8
  %v243 = vrot.slane %v223, 7
  %v244 = vrot.slane %v224, 7
  %v245 = vrot.slane %v225, 7
  %v246 = vrot.slane %v226, 7
  %vm247 = vcmp.lt.s32.totalorder %v241, 1
  %v248 = vsel %vm247, %v243, %v245
  %v249 = vsel %vm247, %v244, %v246
  %v250 = vsel %vm247, %v245, %v243
  %v251 = vsel %vm247, %v246, %v244
  %vm252 = vcmp.ge.s32.totalorder %v241, 1
  %vm253 = vcmp.ge.s32.totalorder %v242, 1
  %v254 = vsel %vm252, %v250, 0.0
  %v255 = vsel %vm252, %v251, 0.0
  %v256 = vsel %vm253, %v248, 0.0
  %v257 = vsel %vm253, %v249, 0.0
  %v258 = vrot.slane %v223, 1
  %v259 = vrot.slane %v224, 1
  %v260 = vrot.slane %v225, 1
  %v261 = vrot.slane %v226, 1
  %vm262 = vcmp.lt.s32.totalorder %v241, 7
  %v263 = vsel %vm262, %v258, %v260
  %v264 = vsel %vm262, %v259, %v261
  %v265 = vsel %vm262, %v260, %v258
  %v266 = vsel %vm262, %v261, %v259
  %vm267 = vcmp.lt.s32.totalorder %v241, 15
  %vm268 = vcmp.lt.s32.totalorder %v242, 15
  %v269 = vsel %vm267, %v263, 0.0
  %v270 = vsel %vm267, %v264, 0.0
  %v271 = vsel %vm268, %v265, 0.0
  %v272 = vsel %vm268, %v266, 0.0
  %v273 = vlaneseq
  %v274 = vshrl.u32 %v273, 7
  %v275 = vsub.s32 4, %v274
  %v276 = vrot.slane %v231, %v275
  %v277 = vlaneseq
  %v278 = vshrl.u32 %v277, 7
  %v279 = vsub.s32 4, %v278
  %v280 = vrot.slane %v232, %v279
  %v281 = vmul.f32 %v223, %v276
  %v282 = vmul.f32 %v224, %v280
  %v283 = vmul.f32 %v225, %v276
  %v284 = vmul.f32 %v226, %v280
  %285 = vrot.lane.b32.xlu0 %v254, 16
  %v286 = vpop.permute.xlu0 %285
  %287 = vrot.lane.b32.xlu0 %v256, 16
  %v288 = vpop.permute.xlu0 %287
  %289 = vrot.lane.b32.xlu0 %v255, 16
  %v290 = vpop.permute.xlu0 %289
  %291 = vrot.lane.b32.xlu0 %v257, 16
  %v292 = vpop.permute.xlu0 %291
  %v293 = vlaneseq
  %v294 = vand.u32 %v293, 127
  %vm295 = vcmp.lt.s32.totalorder %v294, 16
  %v296 = vsel %vm295, %v286, %v290
  %v297 = vsel %vm295, %v288, %v292
  %v298 = vsel %vm295, %v290, %v286
  %v299 = vsel %vm295, %v292, %v288
  %v300 = vlaneseq
  %v301 = vshrl.u32 %v300, 7
  %v302 = vsub.s32 0, %v301
  %v303 = vrot.slane %v231, %v302
  %v304 = vlaneseq
  %v305 = vshrl.u32 %v304, 7
  %v306 = vsub.s32 0, %v305
  %v307 = vrot.slane %v232, %v306
  %v308 = vmul.f32 %v298, %v303
  %v309 = vmul.f32 %v296, %v307
  %v310 = vmul.f32 %v299, %v303
  %v311 = vmul.f32 %v297, %v307
  %v312 = vadd.f32 %v281, %v308
  %v313 = vadd.f32 %v282, %v309
  %v314 = vadd.f32 %v283, %v310
  %v315 = vadd.f32 %v284, %v311
  %v316 = vlaneseq
  %v317 = vshrl.u32 %v316, 7
  %v318 = vsub.s32 1, %v317
  %v319 = vrot.slane %v231, %v318
  %v320 = vlaneseq
  %v321 = vshrl.u32 %v320, 7
  %v322 = vsub.s32 1, %v321
  %v323 = vrot.slane %v232, %v322
  %v324 = vmul.f32 %v254, %v319
  %v325 = vmul.f32 %v255, %v323
  %v326 = vmul.f32 %v256, %v319
  %v327 = vmul.f32 %v257, %v323
  %v328 = vadd.f32 %v312, %v324
  %v329 = vadd.f32 %v313, %v325
  %v330 = vadd.f32 %v314, %v326
  %v331 = vadd.f32 %v315, %v327
  %332 = vrot.lane.b32.xlu0 %v254, 112
  %v333 = vpop.permute.xlu0 %332
  %334 = vrot.lane.b32.xlu0 %v256, 112
  %v335 = vpop.permute.xlu0 %334
  %336 = vrot.lane.b32.xlu0 %v255, 112
  %v337 = vpop.permute.xlu0 %336
  %338 = vrot.lane.b32.xlu0 %v257, 112
  %v339 = vpop.permute.xlu0 %338
  %vm340 = vcmp.lt.s32.totalorder %v294, 112
  %v341 = vsel %vm340, %v333, %v337
  %v342 = vsel %vm340, %v335, %v339
  %v343 = vsel %vm340, %v337, %v333
  %v344 = vsel %vm340, %v339, %v335
  %v345 = vlaneseq
  %v346 = vshrl.u32 %v345, 7
  %v347 = vsub.s32 2, %v346
  %v348 = vrot.slane %v231, %v347
  %v349 = vlaneseq
  %v350 = vshrl.u32 %v349, 7
  %v351 = vsub.s32 2, %v350
  %v352 = vrot.slane %v232, %v351
  %v353 = vmul.f32 %v341, %v348
  %v354 = vmul.f32 %v343, %v352
  %v355 = vmul.f32 %v342, %v348
  %v356 = vmul.f32 %v344, %v352
  %v357 = vadd.f32 %v328, %v353
  %v358 = vadd.f32 %v329, %v354
  %v359 = vadd.f32 %v330, %v355
  %v360 = vadd.f32 %v331, %v356
  %361 = vrot.lane.b32.xlu0 %v223, 16
  %v362 = vpop.permute.xlu0 %361
  %363 = vrot.lane.b32.xlu0 %v225, 16
  %v364 = vpop.permute.xlu0 %363
  %365 = vrot.lane.b32.xlu0 %v224, 16
  %v366 = vpop.permute.xlu0 %365
  %367 = vrot.lane.b32.xlu0 %v226, 16
  %v368 = vpop.permute.xlu0 %367
  %v369 = vsel %vm295, %v362, %v366
  %v370 = vsel %vm295, %v364, %v368
  %v371 = vsel %vm295, %v366, %v362
  %v372 = vsel %vm295, %v368, %v364
  %v373 = vlaneseq
  %v374 = vshrl.u32 %v373, 7
  %v375 = vsub.s32 3, %v374
  %v376 = vrot.slane %v231, %v375
  %v377 = vlaneseq
  %v378 = vshrl.u32 %v377, 7
  %v379 = vsub.s32 3, %v378
  %v380 = vrot.slane %v232, %v379
  %v381 = vmul.f32 %v371, %v376
  %v382 = vmul.f32 %v369, %v380
  %v383 = vmul.f32 %v372, %v376
  %v384 = vmul.f32 %v370, %v380
  %v385 = vadd.f32 %v357, %v381
  %v386 = vadd.f32 %v358, %v382
  %v387 = vadd.f32 %v359, %v383
  %v388 = vadd.f32 %v360, %v384
  %389 = vrot.lane.b32.xlu0 %v223, 112
  %v390 = vpop.permute.xlu0 %389
  %391 = vrot.lane.b32.xlu0 %v225, 112
  %v392 = vpop.permute.xlu0 %391
  %393 = vrot.lane.b32.xlu0 %v224, 112
  %v394 = vpop.permute.xlu0 %393
  %395 = vrot.lane.b32.xlu0 %v226, 112
  %v396 = vpop.permute.xlu0 %395
  %v397 = vsel %vm340, %v390, %v394
  %v398 = vsel %vm340, %v392, %v396
  %v399 = vsel %vm340, %v394, %v390
  %v400 = vsel %vm340, %v396, %v392
  %v401 = vlaneseq
  %v402 = vshrl.u32 %v401, 7
  %v403 = vsub.s32 5, %v402
  %v404 = vrot.slane %v231, %v403
  %v405 = vlaneseq
  %v406 = vshrl.u32 %v405, 7
  %v407 = vsub.s32 5, %v406
  %v408 = vrot.slane %v232, %v407
  %v409 = vmul.f32 %v397, %v404
  %v410 = vmul.f32 %v399, %v408
  %v411 = vmul.f32 %v398, %v404
  %v412 = vmul.f32 %v400, %v408
  %v413 = vadd.f32 %v385, %v409
  %v414 = vadd.f32 %v386, %v410
  %v415 = vadd.f32 %v387, %v411
  %v416 = vadd.f32 %v388, %v412
  %417 = vrot.lane.b32.xlu0 %v269, 16
  %v418 = vpop.permute.xlu0 %417
  %419 = vrot.lane.b32.xlu0 %v271, 16
  %v420 = vpop.permute.xlu0 %419
  %421 = vrot.lane.b32.xlu0 %v270, 16
  %v422 = vpop.permute.xlu0 %421
  %423 = vrot.lane.b32.xlu0 %v272, 16
  %v424 = vpop.permute.xlu0 %423
  %v425 = vsel %vm295, %v418, %v422
  %v426 = vsel %vm295, %v420, %v424
  %v427 = vsel %vm295, %v422, %v418
  %v428 = vsel %vm295, %v424, %v420
  %v429 = vlaneseq
  %v430 = vshrl.u32 %v429, 7
  %v431 = vsub.s32 6, %v430
  %v432 = vrot.slane %v231, %v431
  %v433 = vlaneseq
  %v434 = vshrl.u32 %v433, 7
  %v435 = vsub.s32 6, %v434
  %v436 = vrot.slane %v232, %v435
  %v437 = vmul.f32 %v427, %v432
  %v438 = vmul.f32 %v425, %v436
  %v439 = vmul.f32 %v428, %v432
  %v440 = vmul.f32 %v426, %v436
  %v441 = vadd.f32 %v413, %v437
  %v442 = vadd.f32 %v414, %v438
  %v443 = vadd.f32 %v415, %v439
  %v444 = vadd.f32 %v416, %v440
  %v445 = vlaneseq
  %v446 = vshrl.u32 %v445, 7
  %v447 = vsub.s32 7, %v446
  %v448 = vrot.slane %v231, %v447
  %v449 = vlaneseq
  %v450 = vshrl.u32 %v449, 7
  %v451 = vsub.s32 7, %v450
  %v452 = vrot.slane %v232, %v451
  %v453 = vmul.f32 %v269, %v448
  %v454 = vmul.f32 %v270, %v452
  %v455 = vmul.f32 %v271, %v448
  %v456 = vmul.f32 %v272, %v452
  %v457 = vadd.f32 %v441, %v453
  %v458 = vadd.f32 %v442, %v454
  %v459 = vadd.f32 %v443, %v455
  %v460 = vadd.f32 %v444, %v456
  %461 = vrot.lane.b32.xlu0 %v269, 112
  %v462 = vpop.permute.xlu0 %461
  %463 = vrot.lane.b32.xlu0 %v271, 112
  %v464 = vpop.permute.xlu0 %463
  %465 = vrot.lane.b32.xlu0 %v270, 112
  %v466 = vpop.permute.xlu0 %465
  %467 = vrot.lane.b32.xlu0 %v272, 112
  %v468 = vpop.permute.xlu0 %467
  %v469 = vsel %vm340, %v462, %v466
  %v470 = vsel %vm340, %v464, %v468
  %v471 = vsel %vm340, %v466, %v462
  %v472 = vsel %vm340, %v468, %v464
  %v473 = vlaneseq
  %v474 = vshrl.u32 %v473, 7
  %v475 = vsub.s32 0, %v474
  %v476 = vrot.slane %v233, %v475
  %v477 = vlaneseq
  %v478 = vshrl.u32 %v477, 7
  %v479 = vsub.s32 0, %v478
  %v480 = vrot.slane %v234, %v479
  %v481 = vmul.f32 %v469, %v476
  %v482 = vmul.f32 %v471, %v480
  %v483 = vmul.f32 %v470, %v476
  %v484 = vmul.f32 %v472, %v480
  %v485 = vadd.f32 %v457, %v481
  %v486 = vadd.f32 %v458, %v482
  %v487 = vadd.f32 %v459, %v483
  %v488 = vadd.f32 %v460, %v484
  %v490 = vlaneseq
  %v491 = vshrl.u32 %v490, 7
  %v492 = vsub.s32 0, %v491
  %v493 = vrot.slane %v235, %v492
  %v494 = vlaneseq
  %v495 = vshrl.u32 %v494, 7
  %v496 = vsub.s32 1, %v495
  %v497 = vrot.slane %v235, %v496
  %v500 = vadd.f32 %v485, %v493
  %v501 = vadd.f32 %v486, %v497
  %v502 = vadd.f32 %v487, %v493
  %v503 = vadd.f32 %v488, %v497
  %v504 = vxor.u32 %v500, 2147483648
  %v505 = vxor.u32 %v501, 2147483648
  %v506 = vxor.u32 %v502, 2147483648
  %v507 = vxor.u32 %v503, 2147483648
  %v508 = vmul.f32 %v504, 1.442695
  %v509 = vpow.pop %v508
  %v510 = vmul.f32 %v505, 1.442695
  %v511 = vpow.pop %v510
  %v512 = vmul.f32 %v506, 1.442695
  %v513 = vpow.pop %v512
  %v514 = vmul.f32 %v507, 1.442695
  %v515 = vpow.pop %v514
  %v516 = vadd.f32 %v509, 1.0
  %v517 = vadd.f32 %v511, 1.0
  %v518 = vadd.f32 %v513, 1.0
  %v519 = vadd.f32 %v515, 1.0
  %v520 = vrcp.pop %v516
  %v521 = vmul.f32 1.0, %v520
  %v522 = vrcp.pop %v517
  %v523 = vmul.f32 1.0, %v522
  %v524 = vrcp.pop %v518
  %v525 = vmul.f32 1.0, %v524
  %v526 = vrcp.pop %v519
  %v527 = vmul.f32 1.0, %v526
  %v528 = vmul.f32 %v500, %v521
  %v529 = vmul.f32 %v501, %v523
  %v530 = vmul.f32 %v502, %v525
  %v531 = vmul.f32 %v503, %v527
  %v532 = vadd.f32 %v528, %v530
  %v533 = vrot.slane %v532, 4
  %v534 = vadd.f32 %v532, %v533
  %v535 = vrot.slane %v534, 2
  %v536 = vadd.f32 %v534, %v535
  %v537 = vrot.slane %v536, 1
  %v538 = vadd.f32 %v536, %v537
  %v539 = vadd.f32 %v529, %v531
  %v540 = vrot.slane %v539, 4
  %v541 = vadd.f32 %v539, %v540
  %v542 = vrot.slane %v541, 2
  %v543 = vadd.f32 %v541, %v542
  %v544 = vrot.slane %v543, 1
  %v545 = vadd.f32 %v543, %v544
  %v547 = vlaneseq
  %v548 = vshrl.u32 %v547, 7
  %v549 = vsub.s32 0, %v548
  %v550 = vrot.slane %v236, %v549
  %v551 = vlaneseq
  %v552 = vshrl.u32 %v551, 7
  %v553 = vsub.s32 2, %v552
  %v554 = vrot.slane %v236, %v553
  %v557 = vmul.f32 %v538, %v550
  %v558 = vmul.f32 %v545, %v554
  %vm559 = vcmask 1040384
  %v560 = vsel %vm559, %v557, 0.0
  %v561 = vsel %vm559, %v558, 0.0
  %v562 = vadd.f32 %v560, %v561
  %563 = vadd.xlane.f32.xlu0 %v562
  %v564 = vpop.xlane.xlu0 %563
  %v565 = vadd.f32 %v564, %v237
  %v566 = vxor.u32 %v565, 2147483648
  %v567 = vmul.f32 %v566, 1.442695
  %v568 = vpow.pop %v567
  %v569 = vadd.f32 %v568, 1.0
  %v570 = vrcp.pop %v569
  %v571 = vmul.f32 1.0, %v570
  %v572 = vmul.f32 %v565, %v571
  %574 = vset.pattern.permute.xlu0 0
  %575 = vperm.xlu0 %574, %v572
  %v576 = vpop.permute.xlu0 %575
  %v579 = vlaneseq
  %v580 = vshrl.u32 %v579, 7
  %v581 = vsub.s32 0, %v580
  %v582 = vrot.slane %v238, %v581
  %v583 = vlaneseq
  %v584 = vshrl.u32 %v583, 7
  %v585 = vsub.s32 2, %v584
  %v586 = vrot.slane %v238, %v585
  %v589 = vmul.f32 %v576, %v582
  %v590 = vmul.f32 %v576, %v586
  %v593 = vcombine.low %v589, %v590
  %v595 = vunpack.c.l.s4 1966171168
  %v596 = vunpack.c.0.s8 %v595
  %v597 = vlaneseq
  %v598 = vshrl.u32 %v597, 7
  %v599 = vsub.s32 %v596, %v598
  %v600 = vrot.slane %v593, %v599
  %v602 = vunpack.c.l.s4 1966171168
  %v603 = vunpack.c.0.s8 %v602
  %v604 = vlaneseq
  %v605 = vshrl.u32 %v604, 7
  %v606 = vsub.s32 %v603, %v605
  %v607 = vrot.slane %v600, %v606
  %v609 = vadd.f32 %v239, %v607
  %v610 = vlaneseq
  %v611 = vshrl.u32 %v610, 7
  %v612 = vsub.s32 1, %v611
  %v613 = vrot.slane %v236, %v612
  %v614 = vlaneseq
  %v615 = vshrl.u32 %v614, 7
  %v616 = vsub.s32 3, %v615
  %v617 = vrot.slane %v236, %v616
  %v620 = vmul.f32 %v538, %v613
  %v621 = vmul.f32 %v545, %v617
  %v622 = vsel %vm559, %v620, 0.0
  %v623 = vsel %vm559, %v621, 0.0
  %v624 = vadd.f32 %v622, %v623
  %625 = vadd.xlane.f32.xlu0 %v624
  %v626 = vpop.xlane.xlu0 %625
  %v628 = vlaneseq
  %v629 = vshrl.u32 %v628, 7
  %v630 = vsub.s32 0, %v629
  %v631 = vrot.slane %v237, %v630
  %632 = vrot.lane.b32.xlu0 %v631, 127
  %v633 = vpop.permute.xlu0 %632
  %v635 = vadd.f32 %v626, %v633
  %v636 = vxor.u32 %v635, 2147483648
  %v637 = vmul.f32 %v636, 1.442695
  %v638 = vpow.pop %v637
  %v639 = vadd.f32 %v638, 1.0
  %v640 = vrcp.pop %v639
  %v641 = vmul.f32 1.0, %v640
  %v642 = vmul.f32 %v635, %v641
  %644 = vset.pattern.permute.xlu0 0
  %645 = vperm.xlu0 %644, %v642
  %v646 = vpop.permute.xlu0 %645
  %v648 = vlaneseq
  %v649 = vshrl.u32 %v648, 7
  %v650 = vsub.s32 1, %v649
  %v651 = vrot.slane %v238, %v650
  %v652 = vlaneseq
  %v653 = vshrl.u32 %v652, 7
  %v654 = vsub.s32 3, %v653
  %v655 = vrot.slane %v238, %v654
  %v658 = vmul.f32 %v646, %v651
  %v659 = vmul.f32 %v646, %v655
  %v662 = vcombine.low %v658, %v659
  %v664 = vunpack.c.l.s4 1966171168
  %v665 = vunpack.c.0.s8 %v664
  %v666 = vlaneseq
  %v667 = vshrl.u32 %v666, 7
  %v668 = vsub.s32 %v665, %v667
  %v669 = vrot.slane %v662, %v668
  %v671 = vunpack.c.l.s4 1966171168
  %v672 = vunpack.c.0.s8 %v671
  %v673 = vlaneseq
  %v674 = vshrl.u32 %v673, 7
  %v675 = vsub.s32 %v672, %v674
  %v676 = vrot.slane %v669, %v675
  %v678 = vadd.f32 %v609, %v676
  %v679 = vxor.u32 %v678, 2147483648
  %v680 = vmul.f32 %v679, 1.442695
  %v681 = vpow.pop %v680
  %v682 = vadd.f32 %v681, 1.0
  %v683 = vrcp.pop %v682
  %v684 = vmul.f32 1.0, %v683
  %v686 = vlaneseq
  %v687 = vshrl.u32 %v686, 7
  %v688 = vsub.s32 0, %v687
  %v689 = vrot.slane %v684, %v688
  %v690 = vlaneseq
  %v691 = vshrl.u32 %v690, 7
  %v692 = vsub.s32 1, %v691
  %v693 = vrot.slane %v684, %v692
  %v696 = vmul.f32 %v528, %v689
  %v697 = vmul.f32 %v529, %v693
  %v698 = vmul.f32 %v530, %v689
  %v699 = vmul.f32 %v531, %v693
  %v700 = vrot.slane %v227, 7
  %v701 = vrot.slane %v228, 7
  %v702 = vrot.slane %v229, 7
  %v703 = vrot.slane %v230, 7
  %v704 = vsel %vm247, %v700, %v702
  %v705 = vsel %vm247, %v701, %v703
  %v706 = vsel %vm247, %v702, %v700
  %v707 = vsel %vm247, %v703, %v701
  %v708 = vsel %vm252, %v706, 0.0
  %v709 = vsel %vm252, %v707, 0.0
  %v710 = vsel %vm253, %v704, 0.0
  %v711 = vsel %vm253, %v705, 0.0
  %v712 = vrot.slane %v227, 1
  %v713 = vrot.slane %v228, 1
  %v714 = vrot.slane %v229, 1
  %v715 = vrot.slane %v230, 1
  %v716 = vsel %vm262, %v712, %v714
  %v717 = vsel %vm262, %v713, %v715
  %v718 = vsel %vm262, %v714, %v712
  %v719 = vsel %vm262, %v715, %v713
  %v720 = vsel %vm267, %v716, 0.0
  %v721 = vsel %vm267, %v717, 0.0
  %v722 = vsel %vm268, %v718, 0.0
  %v723 = vsel %vm268, %v719, 0.0
  %v724 = vmul.f32 %v227, %v276
  %v725 = vmul.f32 %v228, %v280
  %v726 = vmul.f32 %v229, %v276
  %v727 = vmul.f32 %v230, %v280
  %728 = vrot.lane.b32.xlu0 %v708, 16
  %v729 = vpop.permute.xlu0 %728
  %730 = vrot.lane.b32.xlu0 %v710, 16
  %v731 = vpop.permute.xlu0 %730
  %732 = vrot.lane.b32.xlu0 %v709, 16
  %v733 = vpop.permute.xlu0 %732
  %734 = vrot.lane.b32.xlu0 %v711, 16
  %v735 = vpop.permute.xlu0 %734
  %v736 = vsel %vm295, %v729, %v733
  %v737 = vsel %vm295, %v731, %v735
  %v738 = vsel %vm295, %v733, %v729
  %v739 = vsel %vm295, %v735, %v731
  %v740 = vmul.f32 %v738, %v303
  %v741 = vmul.f32 %v736, %v307
  %v742 = vmul.f32 %v739, %v303
  %v743 = vmul.f32 %v737, %v307
  %v744 = vadd.f32 %v724, %v740
  %v745 = vadd.f32 %v725, %v741
  %v746 = vadd.f32 %v726, %v742
  %v747 = vadd.f32 %v727, %v743
  %v748 = vmul.f32 %v708, %v319
  %v749 = vmul.f32 %v709, %v323
  %v750 = vmul.f32 %v710, %v319
  %v751 = vmul.f32 %v711, %v323
  %v752 = vadd.f32 %v744, %v748
  %v753 = vadd.f32 %v745, %v749
  %v754 = vadd.f32 %v746, %v750
  %v755 = vadd.f32 %v747, %v751
  %756 = vrot.lane.b32.xlu0 %v708, 112
  %v757 = vpop.permute.xlu0 %756
  %758 = vrot.lane.b32.xlu0 %v710, 112
  %v759 = vpop.permute.xlu0 %758
  %760 = vrot.lane.b32.xlu0 %v709, 112
  %v761 = vpop.permute.xlu0 %760
  %762 = vrot.lane.b32.xlu0 %v711, 112
  %v763 = vpop.permute.xlu0 %762
  %v764 = vsel %vm340, %v757, %v761
  %v765 = vsel %vm340, %v759, %v763
  %v766 = vsel %vm340, %v761, %v757
  %v767 = vsel %vm340, %v763, %v759
  %v768 = vmul.f32 %v764, %v348
  %v769 = vmul.f32 %v766, %v352
  %v770 = vmul.f32 %v765, %v348
  %v771 = vmul.f32 %v767, %v352
  %v772 = vadd.f32 %v752, %v768
  %v773 = vadd.f32 %v753, %v769
  %v774 = vadd.f32 %v754, %v770
  %v775 = vadd.f32 %v755, %v771
  %776 = vrot.lane.b32.xlu0 %v227, 16
  %v777 = vpop.permute.xlu0 %776
  %778 = vrot.lane.b32.xlu0 %v229, 16
  %v779 = vpop.permute.xlu0 %778
  %780 = vrot.lane.b32.xlu0 %v228, 16
  %v781 = vpop.permute.xlu0 %780
  %782 = vrot.lane.b32.xlu0 %v230, 16
  %v783 = vpop.permute.xlu0 %782
  %v784 = vsel %vm295, %v777, %v781
  %v785 = vsel %vm295, %v779, %v783
  %v786 = vsel %vm295, %v781, %v777
  %v787 = vsel %vm295, %v783, %v779
  %v788 = vmul.f32 %v786, %v376
  %v789 = vmul.f32 %v784, %v380
  %v790 = vmul.f32 %v787, %v376
  %v791 = vmul.f32 %v785, %v380
  %v792 = vadd.f32 %v772, %v788
  %v793 = vadd.f32 %v773, %v789
  %v794 = vadd.f32 %v774, %v790
  %v795 = vadd.f32 %v775, %v791
  %796 = vrot.lane.b32.xlu0 %v227, 112
  %v797 = vpop.permute.xlu0 %796
  %798 = vrot.lane.b32.xlu0 %v229, 112
  %v799 = vpop.permute.xlu0 %798
  %800 = vrot.lane.b32.xlu0 %v228, 112
  %v801 = vpop.permute.xlu0 %800
  %802 = vrot.lane.b32.xlu0 %v230, 112
  %v803 = vpop.permute.xlu0 %802
  %v804 = vsel %vm340, %v797, %v801
  %v805 = vsel %vm340, %v799, %v803
  %v806 = vsel %vm340, %v801, %v797
  %v807 = vsel %vm340, %v803, %v799
  %v808 = vmul.f32 %v804, %v404
  %v809 = vmul.f32 %v806, %v408
  %v810 = vmul.f32 %v805, %v404
  %v811 = vmul.f32 %v807, %v408
  %v812 = vadd.f32 %v792, %v808
  %v813 = vadd.f32 %v793, %v809
  %v814 = vadd.f32 %v794, %v810
  %v815 = vadd.f32 %v795, %v811
  %816 = vrot.lane.b32.xlu0 %v720, 16
  %v817 = vpop.permute.xlu0 %816
  %818 = vrot.lane.b32.xlu0 %v722, 16
  %v819 = vpop.permute.xlu0 %818
  %820 = vrot.lane.b32.xlu0 %v721, 16
  %v821 = vpop.permute.xlu0 %820
  %822 = vrot.lane.b32.xlu0 %v723, 16
  %v823 = vpop.permute.xlu0 %822
  %v824 = vsel %vm295, %v817, %v821
  %v825 = vsel %vm295, %v819, %v823
  %v826 = vsel %vm295, %v821, %v817
  %v827 = vsel %vm295, %v823, %v819
  %v828 = vmul.f32 %v826, %v432
  %v829 = vmul.f32 %v824, %v436
  %v830 = vmul.f32 %v827, %v432
  %v831 = vmul.f32 %v825, %v436
  %v832 = vadd.f32 %v812, %v828
  %v833 = vadd.f32 %v813, %v829
  %v834 = vadd.f32 %v814, %v830
  %v835 = vadd.f32 %v815, %v831
  %v836 = vmul.f32 %v720, %v448
  %v837 = vmul.f32 %v721, %v452
  %v838 = vmul.f32 %v722, %v448
  %v839 = vmul.f32 %v723, %v452
  %v840 = vadd.f32 %v832, %v836
  %v841 = vadd.f32 %v833, %v837
  %v842 = vadd.f32 %v834, %v838
  %v843 = vadd.f32 %v835, %v839
  %844 = vrot.lane.b32.xlu0 %v720, 112
  %v845 = vpop.permute.xlu0 %844
  %846 = vrot.lane.b32.xlu0 %v722, 112
  %v847 = vpop.permute.xlu0 %846
  %848 = vrot.lane.b32.xlu0 %v721, 112
  %v849 = vpop.permute.xlu0 %848
  %850 = vrot.lane.b32.xlu0 %v723, 112
  %v851 = vpop.permute.xlu0 %850
  %v852 = vsel %vm340, %v845, %v849
  %v853 = vsel %vm340, %v847, %v851
  %v854 = vsel %vm340, %v849, %v845
  %v855 = vsel %vm340, %v851, %v847
  %v856 = vmul.f32 %v852, %v476
  %v857 = vmul.f32 %v854, %v480
  %v858 = vmul.f32 %v853, %v476
  %v859 = vmul.f32 %v855, %v480
  %v860 = vadd.f32 %v840, %v856
  %v861 = vadd.f32 %v841, %v857
  %v862 = vadd.f32 %v842, %v858
  %v863 = vadd.f32 %v843, %v859
  %v864 = vadd.f32 %v860, %v493
  %v865 = vadd.f32 %v861, %v497
  %v866 = vadd.f32 %v862, %v493
  %v867 = vadd.f32 %v863, %v497
  %v868 = vxor.u32 %v864, 2147483648
  %v869 = vxor.u32 %v865, 2147483648
  %v870 = vxor.u32 %v866, 2147483648
  %v871 = vxor.u32 %v867, 2147483648
  %v872 = vmul.f32 %v868, 1.442695
  %v873 = vpow.pop %v872
  %v874 = vmul.f32 %v869, 1.442695
  %v875 = vpow.pop %v874
  %v876 = vmul.f32 %v870, 1.442695
  %v877 = vpow.pop %v876
  %v878 = vmul.f32 %v871, 1.442695
  %v879 = vpow.pop %v878
  %v880 = vadd.f32 %v873, 1.0
  %v881 = vadd.f32 %v875, 1.0
  %v882 = vadd.f32 %v877, 1.0
  %v883 = vadd.f32 %v879, 1.0
  %v884 = vrcp.pop %v880
  %v885 = vmul.f32 1.0, %v884
  %v886 = vrcp.pop %v881
  %v887 = vmul.f32 1.0, %v886
  %v888 = vrcp.pop %v882
  %v889 = vmul.f32 1.0, %v888
  %v890 = vrcp.pop %v883
  %v891 = vmul.f32 1.0, %v890
  %v892 = vmul.f32 %v864, %v885
  %v893 = vmul.f32 %v865, %v887
  %v894 = vmul.f32 %v866, %v889
  %v895 = vmul.f32 %v867, %v891
  %v896 = vadd.f32 %v892, %v894
  %v897 = vrot.slane %v896, 4
  %v898 = vadd.f32 %v896, %v897
  %v899 = vrot.slane %v898, 2
  %v900 = vadd.f32 %v898, %v899
  %v901 = vrot.slane %v900, 1
  %v902 = vadd.f32 %v900, %v901
  %v903 = vadd.f32 %v893, %v895
  %v904 = vrot.slane %v903, 4
  %v905 = vadd.f32 %v903, %v904
  %v906 = vrot.slane %v905, 2
  %v907 = vadd.f32 %v905, %v906
  %v908 = vrot.slane %v907, 1
  %v909 = vadd.f32 %v907, %v908
  %v910 = vmul.f32 %v902, %v550
  %v911 = vmul.f32 %v909, %v554
  %v912 = vsel %vm559, %v910, 0.0
  %v913 = vsel %vm559, %v911, 0.0
  %v914 = vadd.f32 %v912, %v913
  %915 = vadd.xlane.f32.xlu0 %v914
  %v916 = vpop.xlane.xlu0 %915
  %v917 = vadd.f32 %v916, %v237
  %v918 = vxor.u32 %v917, 2147483648
  %v919 = vmul.f32 %v918, 1.442695
  %v920 = vpow.pop %v919
  %v921 = vadd.f32 %v920, 1.0
  %v922 = vrcp.pop %v921
  %v923 = vmul.f32 1.0, %v922
  %v924 = vmul.f32 %v917, %v923
  %926 = vset.pattern.permute.xlu0 0
  %927 = vperm.xlu0 %926, %v924
  %v928 = vpop.permute.xlu0 %927
  %v930 = vmul.f32 %v928, %v582
  %v931 = vmul.f32 %v928, %v586
  %v934 = vcombine.low %v930, %v931
  %v936 = vunpack.c.l.s4 1966171168
  %v937 = vunpack.c.0.s8 %v936
  %v938 = vlaneseq
  %v939 = vshrl.u32 %v938, 7
  %v940 = vsub.s32 %v937, %v939
  %v941 = vrot.slane %v934, %v940
  %v943 = vunpack.c.l.s4 1966171168
  %v944 = vunpack.c.0.s8 %v943
  %v945 = vlaneseq
  %v946 = vshrl.u32 %v945, 7
  %v947 = vsub.s32 %v944, %v946
  %v948 = vrot.slane %v941, %v947
  %v950 = vadd.f32 %v239, %v948
  %v951 = vmul.f32 %v902, %v613
  %v952 = vmul.f32 %v909, %v617
  %v953 = vsel %vm559, %v951, 0.0
  %v954 = vsel %vm559, %v952, 0.0
  %v955 = vadd.f32 %v953, %v954
  %956 = vadd.xlane.f32.xlu0 %v955
  %v957 = vpop.xlane.xlu0 %956
  %v958 = vadd.f32 %v957, %v633
  %v959 = vxor.u32 %v958, 2147483648
  %v960 = vmul.f32 %v959, 1.442695
  %v961 = vpow.pop %v960
  %v962 = vadd.f32 %v961, 1.0
  %v963 = vrcp.pop %v962
  %v964 = vmul.f32 1.0, %v963
  %v965 = vmul.f32 %v958, %v964
  %967 = vset.pattern.permute.xlu0 0
  %968 = vperm.xlu0 %967, %v965
  %v969 = vpop.permute.xlu0 %968
  %v971 = vmul.f32 %v969, %v651
  %v972 = vmul.f32 %v969, %v655
  %v975 = vcombine.low %v971, %v972
  %v977 = vunpack.c.l.s4 1966171168
  %v978 = vunpack.c.0.s8 %v977
  %v979 = vlaneseq
  %v980 = vshrl.u32 %v979, 7
  %v981 = vsub.s32 %v978, %v980
  %v982 = vrot.slane %v975, %v981
  %v984 = vunpack.c.l.s4 1966171168
  %v985 = vunpack.c.0.s8 %v984
  %v986 = vlaneseq
  %v987 = vshrl.u32 %v986, 7
  %v988 = vsub.s32 %v985, %v987
  %v989 = vrot.slane %v982, %v988
  %v991 = vadd.f32 %v950, %v989
  %v992 = vxor.u32 %v991, 2147483648
  %v993 = vmul.f32 %v992, 1.442695
  %v994 = vpow.pop %v993
  %v995 = vadd.f32 %v994, 1.0
  %v996 = vrcp.pop %v995
  %v997 = vmul.f32 1.0, %v996
  %v999 = vlaneseq
  %v1000 = vshrl.u32 %v999, 7
  %v1001 = vsub.s32 0, %v1000
  %v1002 = vrot.slane %v997, %v1001
  %v1003 = vlaneseq
  %v1004 = vshrl.u32 %v1003, 7
  %v1005 = vsub.s32 1, %v1004
  %v1006 = vrot.slane %v997, %v1005
  %v1009 = vmul.f32 %v892, %v1002
  %v1010 = vmul.f32 %v893, %v1006
  %v1011 = vmul.f32 %v894, %v1002
  %v1012 = vmul.f32 %v895, %v1006
  %v1013 = vld [vmem:[%s9] sm:$0xff]
  %v1014 = vld [vmem:[%s9 + $0x8] sm:$0xff]
  %v1015 = vld [vmem:[%s9 + $0x10] sm:$0xff]
  %v1016 = vld [vmem:[%s9 + $0x18] sm:$0xff]
  %v1017 = vld [vmem:[%s9 + $0x20] sm:$0xff]
  %v1018 = vld [vmem:[%s9 + $0x28] sm:$0xff]
  %v1019 = vld [vmem:[%s9 + $0x30] sm:$0xff]
  %v1020 = vld [vmem:[%s9 + $0x38] sm:$0xff]
  %v1021 = vld [vmem:[%s9 + $0x40] sm:$0xff]
  %v1022 = vld [vmem:[%s9 + $0x48] sm:$0xff]
  %v1023 = vld [vmem:[%s9 + $0x50] sm:$0xff]
  %v1024 = vld [vmem:[%s9 + $0x58] sm:$0xff]
  %v1025 = vld [vmem:[%s9 + $0x60] sm:$0xff]
  %v1026 = vld [vmem:[%s9 + $0x68] sm:$0xff]
  %v1027 = vld [vmem:[%s9 + $0x70] sm:$0xff]
  %v1028 = vld [vmem:[%s9 + $0x78] sm:$0xff]
  %v1029 = vld [vmem:[%s9 + $0x80] sm:$0xff]
  %v1030 = vld [vmem:[%s9 + $0x88] sm:$0xff]
  %v1031 = vld [vmem:[%s9 + $0x90] sm:$0xff]
  %v1032 = vld [vmem:[%s9 + $0x98] sm:$0xff]
  %v1033 = vld [vmem:[%s9 + $0xa0] sm:$0xff]
  %v1034 = vld [vmem:[%s9 + $0xa8] sm:$0xff]
  %v1035 = vld [vmem:[%s9 + $0xb0] sm:$0xff]
  %v1036 = vld [vmem:[%s9 + $0xb8] sm:$0xff]
  %v1037 = vld [vmem:[%s9 + $0xc0] sm:$0xff]
  %v1038 = vld [vmem:[%s9 + $0xc8] sm:$0xff]
  %v1039 = vld [vmem:[%s9 + $0xd0] sm:$0xff]
  %v1040 = vld [vmem:[%s9 + $0xd8] sm:$0xff]
  %v1041 = vld [vmem:[%s9 + $0xe0] sm:$0xff]
  %v1042 = vld [vmem:[%s9 + $0xe8] sm:$0xff]
  %v1043 = vld [vmem:[%s9 + $0xf0] sm:$0xff]
  %v1044 = vld [vmem:[%s9 + $0xf8] sm:$0xff]
  %v1045 = vld [vmem:[%s10] sm:$0x1]
  %v1047 = vlaneseq
  %v1048 = vshrl.u32 %v1047, 7
  %v1049 = vsub.s32 0, %v1048
  %v1050 = vrot.slane %v1045, %v1049
  %1052 = vmatprep.subr.mxu0 0.0
  %1053 = vmatpush1.msra.mxu0 %v1013
  %1054 = vmatprep.subr.mxu0 0.0
  %1055 = vmatpush1.msra.mxu0 %v1014
  %1056 = vmatprep.subr.mxu0 0.0
  %1057 = vmatpush1.msra.mxu0 %v1015
  %1058 = vmatprep.subr.mxu0 0.0
  %1059 = vmatpush1.msra.mxu0 %v1016
  %1060 = vmatprep.subr.mxu0 0.0
  %1061 = vmatpush1.msra.mxu0 %v1017
  %1062 = vmatprep.subr.mxu0 0.0
  %1063 = vmatpush1.msra.mxu0 %v1018
  %1064 = vmatprep.subr.mxu0 0.0
  %1065 = vmatpush1.msra.mxu0 %v1019
  %1066 = vmatprep.subr.mxu0 0.0
  %1067 = vmatpush1.msra.mxu0 %v1020
  %1068 = vmatprep.subr.mxu0 0.0
  %1069 = vmatpush1.msra.mxu0 %v1021
  %1070 = vmatprep.subr.mxu0 0.0
  %1071 = vmatpush1.msra.mxu0 %v1022
  %1072 = vmatprep.subr.mxu0 0.0
  %1073 = vmatpush1.msra.mxu0 %v1023
  %1074 = vmatprep.subr.mxu0 0.0
  %1075 = vmatpush1.msra.mxu0 %v1024
  %1076 = vmatprep.subr.mxu0 0.0
  %1077 = vmatpush1.msra.mxu0 %v1025
  %1078 = vmatprep.subr.mxu0 0.0
  %1079 = vmatpush1.msra.mxu0 %v1026
  %1080 = vmatprep.subr.mxu0 0.0
  %1081 = vmatpush1.msra.mxu0 %v1027
  %1082 = vmatprep.subr.mxu0 0.0
  %1083 = vmatpush1.msra.mxu0 %v1028
  %1084 = vmatprep.subr.mxu0 0.0
  %1085 = vmatpush1.msra.mxu0 %v1029
  %1086 = vmatprep.subr.mxu0 0.0
  %1087 = vmatpush1.msra.mxu0 %v1030
  %1088 = vmatprep.subr.mxu0 0.0
  %1089 = vmatpush1.msra.mxu0 %v1031
  %1090 = vmatprep.subr.mxu0 0.0
  %1091 = vmatpush1.msra.mxu0 %v1032
  %1092 = vmatprep.subr.mxu0 0.0
  %1093 = vmatpush1.msra.mxu0 %v1033
  %1094 = vmatprep.subr.mxu0 0.0
  %1095 = vmatpush1.msra.mxu0 %v1034
  %1096 = vmatprep.subr.mxu0 0.0
  %1097 = vmatpush1.msra.mxu0 %v1035
  %1098 = vmatprep.subr.mxu0 0.0
  %1099 = vmatpush1.msra.mxu0 %v1036
  %1100 = vmatprep.subr.mxu0 0.0
  %1101 = vmatpush1.msra.mxu0 %v1037
  %1102 = vmatprep.subr.mxu0 0.0
  %1103 = vmatpush1.msra.mxu0 %v1038
  %1104 = vmatprep.subr.mxu0 0.0
  %1105 = vmatpush1.msra.mxu0 %v1039
  %1106 = vmatprep.subr.mxu0 0.0
  %1107 = vmatpush1.msra.mxu0 %v1040
  %1108 = vmatprep.subr.mxu0 0.0
  %1109 = vmatpush1.msra.mxu0 %v1041
  %1110 = vmatprep.subr.mxu0 0.0
  %1111 = vmatpush1.msra.mxu0 %v1042
  %1112 = vmatprep.subr.mxu0 0.0
  %1113 = vmatpush1.msra.mxu0 %v1043
  %1114 = vmatprep.subr.mxu0 0.0
  %1115 = vmatpush1.msra.mxu0 %v1044
  %1116 = vmatprep.mubr.f32.mxu0 %v697
  %1117 = vmatmul.mubr.f32.gmra.mrb[0].mxu0 %v696
  %v1118 = vpop.f32.mrb[0].mxu0
  %v1119 = vadd.f32 %v1050, %v1118
  %v1120 = vpop.f32.mrb[0].mxu0
  %1121 = vmatprep.mubr.f32.mxu0 %v699
  %1122 = vmatmul.mubr.f32.gmra.mrb[0].mxu0 %v698
  %v1123 = vpop.f32.mrb[0].mxu0
  %v1124 = vadd.f32 %v1050, %v1123
  %v1125 = vpop.f32.mrb[0].mxu0
  %1126 = vmatprep.mubr.f32.mxu0 %v1010
  %1127 = vmatmul.mubr.f32.gmra.mrb[0].mxu0 %v1009
  %v1128 = vpop.f32.mrb[0].mxu0
  %v1129 = vadd.f32 %v1050, %v1128
  %v1130 = vpop.f32.mrb[0].mxu0
  %1131 = vmatprep.mubr.f32.mxu0 %v1012
  %1132 = vmatmul.mubr.f32.gmra.mrb[0].mxu0 %v1011
  %v1133 = vpop.f32.mrb[0].mxu0
  %v1134 = vadd.f32 %v1050, %v1133
  %v1135 = vpop.f32.mrb[0].mxu0
  %1136 = vdwg.mxu0
  %v1137 = vadd.f32 %v1119, %v38
  %v1138 = vadd.f32 %v1124, %v39
  %v1139 = vadd.f32 %v1129, %v40
  %v1140 = vadd.f32 %v1134, %v41
  %1141 = vst [vmem:[%s11] sm:$0xff] %v1137
  %1142 = vst [vmem:[%s11 + $0x8] sm:$0xff] %v1138
  %1143 = vst [vmem:[%s11 + $0x10] sm:$0xff] %v1139
  %1144 = vst [vmem:[%s11 + $0x18] sm:$0xff] %v1140
  // Predicated region
  $region46: #{mbconv_forward.1} parent=0 // pred_check
    _
  $region47: #{mbconv_forward.1} parent=0 // pred_check_branch
    %1146 = sbr.rel (0) target = $region49
  $region48: #{mbconv_forward.1} parent=0 // pred_region
    _
  $region49: #{mbconv_forward.1} parent=0 // pred_fallthru
    _
  // Predicated region
  $region50: #{mbconv_forward.1} parent=0 // pred_check
    _
  $region51: #{mbconv_forward.1} parent=0 // pred_check_branch
    %1148 = sbr.rel (0) target = $region53
  $region52: #{mbconv_forward.1} parent=0 // pred_region
    _
  $region53: #{mbconv_forward.1} parent=0 // pred_fallthru
    _

</llo_original>
